<compile_context>
chip_gen: v7x
topology: tpu7x:2x2x1
jax: 0.10.0
libtpu: 0.0.40
codegen_flags: <defaults>
</compile_context>

<pallas_src>
import jax
import jax.numpy as jnp
from jax.experimental import pallas as pl
from jax.experimental.pallas import tpu as pltpu

HIDDEN = 128                     # nn.Linear(latent_dim, 128)
LN_EPS = 1e-5                    # PyTorch nn.LayerNorm default eps
_INV_SQRT2 = 0.7071067811865476

# Abramowitz & Stegun 7.1.26 erf coefficients with the GELU 0.5 factor pre-folded.
_AS_P = 0.3275911
_AS_C0 = 0.5 * 0.254829592
_AS_C1 = 0.5 * -0.284496736
_AS_C2 = 0.5 * 1.421413741
_AS_C3 = 0.5 * -1.453152027
_AS_C4 = 0.5 * 1.061405429

_STEP_HBM_TARGET = 2 * 1024 * 1024     # >= ~2 MiB of HBM traffic per grid step
_MAX_TILE_B = 8192


def _gelu_exact(h):
    """Exact (erf-based, PyTorch nn.GELU() default) GELU, streamlined.

    Computes Phi(h) = 0.5*(1 + erf(h/sqrt(2))) directly via the A&S 7.1.26
    polynomial (|erf err| <= 1.5e-7, not bit-exact vs torch.erf) with the 0.5 and
    1/sqrt(2) constants folded into the coefficients, so sign handling is a single
    select and there is no 0.5*(1 + ...) epilogue.  exp() goes to the EUP slot.
    """
    z = h * _INV_SQRT2
    az = jnp.abs(z)
    t = 1.0 / (1.0 + _AS_P * az)
    half_erfc = (t * (_AS_C0 + t * (_AS_C1 + t * (_AS_C2 + t * (_AS_C3 + t * _AS_C4))))
                 * jnp.exp(-z * z))
    phi = jnp.where(h >= 0.0, 1.0 - half_erfc, half_erfc)
    return h * phi


def noise_head_kernel(x_ref, w1_ref, b1_ref, gamma_ref, beta_ref, w2_ref, b2_ref, o_ref):
    # x: (TILE_B, D) f32|bf16   w1: (D, 128) same dtype   b1/gamma/beta: (1, 128) f32
    # w2: (128, O) f32|bf16     b2: (1, O) f32             o: (TILE_B, O) f32
    # detector[0]: Linear(D, 128) -- MXU, f32 accumulation regardless of operand dtype.
    h = jnp.dot(x_ref[...], w1_ref[...], preferred_element_type=jnp.float32) + b1_ref[...]

    # detector[1]: LayerNorm(128) over channels (lanes): biased variance, eps inside rsqrt.
    mean = jnp.mean(h, axis=-1, keepdims=True)
    cen = h - mean
    var = jnp.mean(cen * cen, axis=-1, keepdims=True)
    h = cen * jax.lax.rsqrt(var + LN_EPS) * gamma_ref[...] + beta_ref[...]

    # detector[2]: exact GELU (f32 VPU/EUP math).
    h = _gelu_exact(h)

    # detector[3]: Linear(128, O) -- MXU, f32 accumulation; then sigmoid (EUP logistic).
    y = jnp.dot(h.astype(w2_ref.dtype), w2_ref[...],
                preferred_element_type=jnp.float32) + b2_ref[...]
    o_ref[...] = jax.nn.sigmoid(y)


def _round_up(n, m):
    return ((n + m - 1) // m) * m


_const_imap = lambda i: (0, 0)


def _param_spec(shape, single_buffer):
    """Constant-index parameter spec: VMEM-resident, fetched exactly once.

    Single-buffered via pipeline_mode=pl.Buffered(1) when supported; the default
    double buffer would waste a second VMEM copy of w1 / w2.
    """
    if single_buffer and hasattr(pl, "Buffered"):
        try:
            return pl.BlockSpec(shape, _const_imap, pipeline_mode=pl.Buffered(1))
        except TypeError:        # older jax without the pipeline_mode kwarg
            pass
    return pl.BlockSpec(shape, _const_imap)


def _choose_tile_b(B, D, O, x_itemsize, weight_vmem_bytes, vmem_budget):
    """Pick (tile_b, n_steps) for the batch grid.

    (a) >= ~2 MiB of HBM traffic per step (amortizes the ~0.35 us/step overhead),
    (b) double-buffered x/out tiles + f32 hidden intermediates + weights fit the
        smallest per-core VMEM budget (v7x),
    (c) grid >= 2 so the "parallel" batch axis feeds both v7x TensorCores,
    (d) tile re-balanced into near-equal steps to minimize batch padding.
    """
    g = 8 if x_itemsize >= 4 else 16                 # sublane granule (16 for bf16 tiles)
    row_hbm = x_itemsize * D + 4 * O
    row_vmem = 2 * x_itemsize * D + 2 * 4 * O + 6 * 4 * HIDDEN
    tile = pl.cdiv(_STEP_HBM_TARGET, row_hbm)                                   # (a)
    tile = min(tile, max(g, (vmem_budget - weight_vmem_bytes) // row_vmem))     # (b)
    tile = max(g, min(tile, _MAX_TILE_B))
    n_steps = max(1, pl.cdiv(B, tile))
    if B >= 2 * g:                                                              # (c)
        n_steps = max(2, n_steps)
    tile = _round_up(pl.cdiv(B, n_steps), g)                                    # (d)
    return tile, n_steps


def init_params(key, latent_dim, input_dim, hidden=HIDDEN):
    """Deterministic parameter init mimicking PyTorch Linear/LayerNorm defaults."""
    k1, k2, k3, k4 = jax.random.split(key, 4)
    bound1 = 1.0 / (latent_dim ** 0.5)
    bound2 = 1.0 / (hidden ** 0.5)
    return {
        # Linear(latent_dim, 128): weight stored transposed as (D, 128)
        "w1t": jax.random.uniform(k1, (latent_dim, hidden), jnp.float32, -bound1, bound1),
        "b1": jax.random.uniform(k2, (1, hidden), jnp.float32, -bound1, bound1),
        # LayerNorm(128): weight=1, bias=0 (PyTorch default init)
        "gamma": jnp.ones((1, hidden), jnp.float32),
        "beta": jnp.zeros((1, hidden), jnp.float32),
        # Linear(128, input_dim): weight stored transposed as (128, O)
        "w2t": jax.random.uniform(k3, (hidden, input_dim), jnp.float32, -bound2, bound2),
        "b2": jax.random.uniform(k4, (1, input_dim), jnp.float32, -bound2, bound2),
    }


def noise_head(x, params, *, tile_b=None, mxu_dtype=jnp.bfloat16):
    """x: (B, latent_dim) f32 -> (B, input_dim) f32 sigmoid scores.

    mxu_dtype=jnp.bfloat16 (default): bf16 MXU operands + bf16 x HBM stream with f32
    accumulation and f32 VPU math.  mxu_dtype=None: exact f32 end to end.
    """
    B, D = x.shape
    H = params["w1t"].shape[1]
    O = params["w2t"].shape[1]

    if mxu_dtype is None:
        x_in, w1, w2 = x, params["w1t"], params["w2t"]
    else:
        x_in = x.astype(mxu_dtype)
        w1 = params["w1t"].astype(mxu_dtype)
        w2 = params["w2t"].astype(mxu_dtype)
    xsz = x_in.dtype.itemsize
    wsz = w1.dtype.itemsize

    # VMEM budget: 3/4 of physical per-core VMEM, capped at 96 MiB (v5e/v6e),
    # which lands at 48 MiB on v7x's 64 MiB cores.
    try:
        vmem_physical = int(pltpu.get_tpu_info().vmem_capacity_bytes)
    except Exception:
        vmem_physical = 64 * 1024 * 1024          # assume the smallest (v7x per-TC)
    vmem_limit = max(32 * 1024 * 1024,
                     min((vmem_physical * 3) // 4, 96 * 1024 * 1024))

    w_hbm = D * H * wsz + H * O * wsz + (3 * H + O) * 4
    if tile_b is None:
        tb, n_steps = _choose_tile_b(B, D, O, xsz, 2 * w_hbm,
                                     vmem_limit - 4 * 1024 * 1024)
    else:
        g = 8 if xsz >= 4 else 16
        tb = max(g, _round_up(min(int(tile_b), _round_up(B, g)), g))
        n_steps = pl.cdiv(B, tb)
    Bp = tb * n_steps
    if Bp != B:
        x_in = jnp.pad(x_in, ((0, Bp - B), (0, 0)))    # padded rows are sliced off below

    cost = pl.CostEstimate(
        flops=2 * Bp * H * (D + O),
        transcendentals=Bp * (H + O),                  # GELU exp + sigmoid
        bytes_accessed=Bp * (D * xsz + 4 * O) + w_hbm,
    )

    def _run(single_buffer_params):
        return pl.pallas_call(
            noise_head_kernel,
            out_shape=jax.ShapeDtypeStruct((Bp, O), jnp.float32),
            grid_spec=pltpu.PrefetchScalarGridSpec(
                num_scalar_prefetch=0,
                grid=(n_steps,),
                in_specs=[
                    pl.BlockSpec((tb, D), lambda i: (i, 0)),            # x
                    _param_spec((D, H), single_buffer_params),          # w1t
                    _param_spec((1, H), single_buffer_params),          # b1
                    _param_spec((1, H), single_buffer_params),          # gamma
                    _param_spec((1, H), single_buffer_params),          # beta
                    _param_spec((H, O), single_buffer_params),          # w2t
                    _param_spec((1, O), single_buffer_params),          # b2
                ],
                out_specs=pl.BlockSpec((tb, O), lambda i: (i, 0)),
            ),
            compiler_params=pltpu.CompilerParams(
                dimension_semantics=("parallel",),      # megacore sharding on v7x
                vmem_limit_bytes=vmem_limit,
            ),
            cost_estimate=cost,
        )(x_in, w1, params["b1"], params["gamma"], params["beta"], w2, params["b2"])

    try:
        out = _run(single_buffer_params=True)
    except Exception:
        # pl.Buffered(1) single-buffering unsupported on this jax/libtpu combo: fall back
        # to default double-buffered parameter specs (costs one extra w1/w2 VMEM copy).
        out = _run(single_buffer_params=False)

    return out[:B] if Bp != B else out


def noise_head_reference(x, params):
    """Pure-JAX reference matching the PyTorch forward (exact erf GELU, true-f32 matmuls)."""
    hp = jax.lax.Precision.HIGHEST
    h = jnp.dot(x, params["w1t"], precision=hp) + params["b1"]
    mean = jnp.mean(h, axis=-1, keepdims=True)
    var = jnp.mean((h - mean) ** 2, axis=-1, keepdims=True)
    h = (h - mean) * jax.lax.rsqrt(var + LN_EPS) * params["gamma"] + params["beta"]
    h = jax.nn.gelu(h, approximate=False)
    y = jnp.dot(h, params["w2t"], precision=hp) + params["b2"]
    return jax.nn.sigmoid(y)


if __name__ == "__main__":
    key = jax.random.PRNGKey(0)
    k_x, k_p = jax.random.split(key)

    config = {"latent_dim": 32, "input_dim": 32}
    batch = 16

    x = jax.random.normal(k_x, (batch, config["latent_dim"]), dtype=jnp.float32)
    params = init_params(k_p, config["latent_dim"], config["input_dim"])

    ref = jax.block_until_ready(noise_head_reference(x, params))

    # Exact-parity path (f32 MXU operands end to end).
    out_f32 = jax.block_until_ready(noise_head(x, params, mxu_dtype=None))
    assert out_f32.shape == (batch, config["input_dim"])
    assert out_f32.dtype == jnp.float32
    assert bool(jnp.all(jnp.isfinite(out_f32)))
    assert bool(jnp.all((out_f32 >= 0.0) & (out_f32 <= 1.0)))
    assert bool(jnp.allclose(out_f32, ref, atol=1e-4, rtol=1e-4))

    # Default fast path (bf16 MXU operands / bf16 x HBM stream, f32 accumulation).
    out_bf16 = jax.block_until_ready(noise_head(x, params))
    assert out_bf16.shape == (batch, config["input_dim"])
    assert out_bf16.dtype == jnp.float32
    assert bool(jnp.all(jnp.isfinite(out_bf16)))
    assert bool(jnp.all((out_bf16 >= 0.0) & (out_bf16 <= 1.0)))
    assert bool(jnp.allclose(out_bf16, ref, atol=2e-2, rtol=2e-2))

    print("KERNEL_OK")
</pallas_src>

<mosaic_0001>
module attributes {stable_mosaic.version = 11 : i64} {
  func.func @noise_head_kernel(%arg0: i32, %arg1: memref<8x32xf32, #tpu.memory_space<vmem>>, %arg2: memref<32x128xf32, #tpu.memory_space<vmem>>, %arg3: memref<1x128xf32, #tpu.memory_space<vmem>>, %arg4: memref<1x128xf32, #tpu.memory_space<vmem>>, %arg5: memref<1x128xf32, #tpu.memory_space<vmem>>, %arg6: memref<128x32xf32, #tpu.memory_space<vmem>>, %arg7: memref<1x32xf32, #tpu.memory_space<vmem>>, %arg8: memref<8x32xf32, #tpu.memory_space<vmem>>) attributes {dimension_semantics = [#tpu.dimension_semantics<parallel>], iteration_bounds = array<i64: 2>, scalar_prefetch = 0 : i64, scratch_operands = 0 : i64, tpu.core_type = #tpu.core_type<tc>, window_params = [{transform_indices = @transform_0, window_bounds = array<i64: 8, 32>}, {pipeline_mode = #tpu.pipeline_mode<synchronous>, transform_indices = @transform_1, window_bounds = array<i64: 32, 128>}, {pipeline_mode = #tpu.pipeline_mode<synchronous>, transform_indices = @transform_2, window_bounds = array<i64: 1, 128>}, {pipeline_mode = #tpu.pipeline_mode<synchronous>, transform_indices = @transform_3, window_bounds = array<i64: 1, 128>}, {pipeline_mode = #tpu.pipeline_mode<synchronous>, transform_indices = @transform_4, window_bounds = array<i64: 1, 128>}, {pipeline_mode = #tpu.pipeline_mode<synchronous>, transform_indices = @transform_5, window_bounds = array<i64: 128, 32>}, {pipeline_mode = #tpu.pipeline_mode<synchronous>, transform_indices = @transform_6, window_bounds = array<i64: 1, 32>}, {transform_indices = @transform_7, window_bounds = array<i64: 8, 32>}]} {
    %c0 = arith.constant 0 : index
    %c0_0 = arith.constant 0 : index
    %0 = vector.load %arg1[%c0, %c0_0] : memref<8x32xf32, #tpu.memory_space<vmem>>, vector<8x32xf32>
    %c0_1 = arith.constant 0 : index
    %c0_2 = arith.constant 0 : index
    %1 = vector.load %arg2[%c0_1, %c0_2] : memref<32x128xf32, #tpu.memory_space<vmem>>, vector<32x128xf32>
    %cst = arith.constant dense<0.000000e+00> : vector<8x128xf32>
    %2 = tpu.matmul %0, %1, %cst {dimension_numbers = #tpu.dot_dimension_numbers<[1], [0], [0], [1], [0, 0, 1, 1], [], []>} : vector<8x32xf32>, vector<32x128xf32>, vector<8x128xf32> -> vector<8x128xf32>
    %c0_3 = arith.constant 0 : index
    %c0_4 = arith.constant 0 : index
    %3 = vector.load %arg3[%c0_3, %c0_4] : memref<1x128xf32, #tpu.memory_space<vmem>>, vector<1x128xf32>
    %4 = vector.broadcast %3 : vector<1x128xf32> to vector<8x128xf32>
    %5 = arith.addf %2, %4 : vector<8x128xf32>
    %cst_5 = arith.constant dense<0.000000e+00> : vector<8xf32>
    %6 = vector.multi_reduction <add>, %5, %cst_5 [1] : vector<8x128xf32> to vector<8xf32>
    %7 = vector.shape_cast %6 : vector<8xf32> to vector<8x1xf32>
    %cst_6 = arith.constant 1.280000e+02 : f32
    %8 = vector.broadcast %cst_6 : f32 to vector<8x1xf32>
    %9 = arith.divf %7, %8 : vector<8x1xf32>
    %10 = vector.broadcast %9 : vector<8x1xf32> to vector<8x128xf32>
    %11 = arith.subf %5, %10 : vector<8x128xf32>
    %12 = arith.mulf %11, %11 : vector<8x128xf32>
    %cst_7 = arith.constant dense<0.000000e+00> : vector<8xf32>
    %13 = vector.multi_reduction <add>, %12, %cst_7 [1] : vector<8x128xf32> to vector<8xf32>
    %14 = vector.shape_cast %13 : vector<8xf32> to vector<8x1xf32>
    %cst_8 = arith.constant 1.280000e+02 : f32
    %15 = vector.broadcast %cst_8 : f32 to vector<8x1xf32>
    %16 = arith.divf %14, %15 : vector<8x1xf32>
    %cst_9 = arith.constant 9.99999974E-6 : f32
    %17 = vector.broadcast %cst_9 : f32 to vector<8x1xf32>
    %18 = arith.addf %16, %17 : vector<8x1xf32>
    %19 = math.rsqrt %18 : vector<8x1xf32>
    %20 = vector.broadcast %19 : vector<8x1xf32> to vector<8x128xf32>
    %21 = arith.mulf %11, %20 : vector<8x128xf32>
    %c0_10 = arith.constant 0 : index
    %c0_11 = arith.constant 0 : index
    %22 = vector.load %arg4[%c0_10, %c0_11] : memref<1x128xf32, #tpu.memory_space<vmem>>, vector<1x128xf32>
    %23 = vector.broadcast %22 : vector<1x128xf32> to vector<8x128xf32>
    %24 = arith.mulf %21, %23 : vector<8x128xf32>
    %c0_12 = arith.constant 0 : index
    %c0_13 = arith.constant 0 : index
    %25 = vector.load %arg5[%c0_12, %c0_13] : memref<1x128xf32, #tpu.memory_space<vmem>>, vector<1x128xf32>
    %26 = vector.broadcast %25 : vector<1x128xf32> to vector<8x128xf32>
    %27 = arith.addf %24, %26 : vector<8x128xf32>
    %cst_14 = arith.constant 0.707106769 : f32
    %28 = vector.broadcast %cst_14 : f32 to vector<8x128xf32>
    %29 = arith.mulf %27, %28 : vector<8x128xf32>
    %30 = math.absf %29 : vector<8x128xf32>
    %cst_15 = arith.constant 0.327591091 : f32
    %31 = vector.broadcast %cst_15 : f32 to vector<8x128xf32>
    %32 = arith.mulf %31, %30 : vector<8x128xf32>
    %cst_16 = arith.constant 1.000000e+00 : f32
    %33 = vector.broadcast %cst_16 : f32 to vector<8x128xf32>
    %34 = arith.addf %33, %32 : vector<8x128xf32>
    %cst_17 = arith.constant 1.000000e+00 : f32
    %35 = vector.broadcast %cst_17 : f32 to vector<8x128xf32>
    %36 = arith.divf %35, %34 : vector<8x128xf32>
    %cst_18 = arith.constant 0.53070271 : f32
    %37 = vector.broadcast %cst_18 : f32 to vector<8x128xf32>
    %38 = arith.mulf %36, %37 : vector<8x128xf32>
    %cst_19 = arith.constant -0.72657603 : f32
    %39 = vector.broadcast %cst_19 : f32 to vector<8x128xf32>
    %40 = arith.addf %39, %38 : vector<8x128xf32>
    %41 = arith.mulf %36, %40 : vector<8x128xf32>
    %cst_20 = arith.constant 0.710706889 : f32
    %42 = vector.broadcast %cst_20 : f32 to vector<8x128xf32>
    %43 = arith.addf %42, %41 : vector<8x128xf32>
    %44 = arith.mulf %36, %43 : vector<8x128xf32>
    %cst_21 = arith.constant -0.142248362 : f32
    %45 = vector.broadcast %cst_21 : f32 to vector<8x128xf32>
    %46 = arith.addf %45, %44 : vector<8x128xf32>
    %47 = arith.mulf %36, %46 : vector<8x128xf32>
    %cst_22 = arith.constant 0.127414793 : f32
    %48 = vector.broadcast %cst_22 : f32 to vector<8x128xf32>
    %49 = arith.addf %48, %47 : vector<8x128xf32>
    %50 = arith.mulf %36, %49 : vector<8x128xf32>
    %cst_23 = arith.constant 0.000000e+00 : f32
    %51 = vector.broadcast %cst_23 : f32 to vector<8x128xf32>
    %52 = arith.subf %51, %29 : vector<8x128xf32>
    %53 = arith.mulf %52, %29 : vector<8x128xf32>
    %54 = math.exp %53 : vector<8x128xf32>
    %55 = arith.mulf %50, %54 : vector<8x128xf32>
    %cst_24 = arith.constant 0.000000e+00 : f32
    %56 = vector.broadcast %cst_24 : f32 to vector<8x128xf32>
    %57 = arith.cmpf oge, %27, %56 : vector<8x128xf32>
    %cst_25 = arith.constant 1.000000e+00 : f32
    %58 = vector.broadcast %cst_25 : f32 to vector<8x128xf32>
    %59 = arith.subf %58, %55 : vector<8x128xf32>
    %60 = arith.select %57, %59, %55 : vector<8x128xi1>, vector<8x128xf32>
    %61 = arith.mulf %27, %60 : vector<8x128xf32>
    %c0_26 = arith.constant 0 : index
    %c0_27 = arith.constant 0 : index
    %62 = vector.load %arg6[%c0_26, %c0_27] : memref<128x32xf32, #tpu.memory_space<vmem>>, vector<128x32xf32>
    %cst_28 = arith.constant dense<0.000000e+00> : vector<8x32xf32>
    %63 = tpu.matmul %61, %62, %cst_28 {dimension_numbers = #tpu.dot_dimension_numbers<[1], [0], [0], [1], [0, 0, 1, 1], [], []>} : vector<8x128xf32>, vector<128x32xf32>, vector<8x32xf32> -> vector<8x32xf32>
    %c0_29 = arith.constant 0 : index
    %c0_30 = arith.constant 0 : index
    %64 = vector.load %arg7[%c0_29, %c0_30] : memref<1x32xf32, #tpu.memory_space<vmem>>, vector<1x32xf32>
    %65 = vector.broadcast %64 : vector<1x32xf32> to vector<8x32xf32>
    %66 = arith.addf %63, %65 : vector<8x32xf32>
    %67 = arith.negf %66 : vector<8x32xf32>
    %68 = math.exp %67 : vector<8x32xf32>
    %cst_31 = arith.constant 1.000000e+00 : f32
    %69 = vector.broadcast %cst_31 : f32 to vector<8x32xf32>
    %70 = arith.addf %69, %68 : vector<8x32xf32>
    %71 = arith.divf %69, %70 : vector<8x32xf32>
    %c0_32 = arith.constant 0 : index
    %c0_33 = arith.constant 0 : index
    %72 = vector.load %arg8[%c0_32, %c0_33] : memref<8x32xf32, #tpu.memory_space<vmem>>, vector<8x32xf32>
    tpu.vector_store %arg8[%c0_32, %c0_33], %71 {strides = array<i32>} : memref<8x32xf32, #tpu.memory_space<vmem>>, vector<8x32xf32>,
    return
  }
  func.func @transform_0(%arg0: i32) -> (i32, i32) {
    %c0_i32 = arith.constant 0 : i32
    %c0_i32_0 = arith.constant 0 : i32
    return %arg0, %c0_i32 : i32, i32
  }
  func.func @transform_1(%arg0: i32) -> (i32, i32) {
    %c0_i32 = arith.constant 0 : i32
    %c0_i32_0 = arith.constant 0 : i32
    %c0_i32_1 = arith.constant 0 : i32
    return %c0_i32, %c0_i32_0 : i32, i32
  }
  func.func @transform_2(%arg0: i32) -> (i32, i32) {
    %c0_i32 = arith.constant 0 : i32
    %c0_i32_0 = arith.constant 0 : i32
    %c0_i32_1 = arith.constant 0 : i32
    return %c0_i32, %c0_i32_0 : i32, i32
  }
  func.func @transform_3(%arg0: i32) -> (i32, i32) {
    %c0_i32 = arith.constant 0 : i32
    %c0_i32_0 = arith.constant 0 : i32
    %c0_i32_1 = arith.constant 0 : i32
    return %c0_i32, %c0_i32_0 : i32, i32
  }
  func.func @transform_4(%arg0: i32) -> (i32, i32) {
    %c0_i32 = arith.constant 0 : i32
    %c0_i32_0 = arith.constant 0 : i32
    %c0_i32_1 = arith.constant 0 : i32
    return %c0_i32, %c0_i32_0 : i32, i32
  }
  func.func @transform_5(%arg0: i32) -> (i32, i32) {
    %c0_i32 = arith.constant 0 : i32
    %c0_i32_0 = arith.constant 0 : i32
    %c0_i32_1 = arith.constant 0 : i32
    return %c0_i32, %c0_i32_0 : i32, i32
  }
  func.func @transform_6(%arg0: i32) -> (i32, i32) {
    %c0_i32 = arith.constant 0 : i32
    %c0_i32_0 = arith.constant 0 : i32
    %c0_i32_1 = arith.constant 0 : i32
    return %c0_i32, %c0_i32_0 : i32, i32
  }
  func.func @transform_7(%arg0: i32) -> (i32, i32) {
    %c0_i32 = arith.constant 0 : i32
    %c0_i32_0 = arith.constant 0 : i32
    return %arg0, %c0_i32 : i32, i32
  }
}

module attributes {stable_mosaic.version = 11 : i64} {
  func.func @noise_head_kernel(%arg0: i32, %arg1: memref<8x32xf32, #tpu.memory_space<vmem>>, %arg2: memref<32x128xf32, #tpu.memory_space<vmem>>, %arg3: memref<1x128xf32, #tpu.memory_space<vmem>>, %arg4: memref<1x128xf32, #tpu.memory_space<vmem>>, %arg5: memref<1x128xf32, #tpu.memory_space<vmem>>, %arg6: memref<128x32xf32, #tpu.memory_space<vmem>>, %arg7: memref<1x32xf32, #tpu.memory_space<vmem>>, %arg8: memref<8x32xf32, #tpu.memory_space<vmem>>) attributes {dimension_semantics = [#tpu.dimension_semantics<parallel>], iteration_bounds = array<i64: 2>, scalar_prefetch = 0 : i64, scratch_operands = 0 : i64, tpu.core_type = #tpu.core_type<tc>, window_params = [{transform_indices = @transform_0, window_bounds = array<i64: 8, 32>}, {pipeline_mode = #tpu.pipeline_mode<synchronous>, transform_indices = @transform_1, window_bounds = array<i64: 32, 128>}, {pipeline_mode = #tpu.pipeline_mode<synchronous>, transform_indices = @transform_2, window_bounds = array<i64: 1, 128>}, {pipeline_mode = #tpu.pipeline_mode<synchronous>, transform_indices = @transform_3, window_bounds = array<i64: 1, 128>}, {pipeline_mode = #tpu.pipeline_mode<synchronous>, transform_indices = @transform_4, window_bounds = array<i64: 1, 128>}, {pipeline_mode = #tpu.pipeline_mode<synchronous>, transform_indices = @transform_5, window_bounds = array<i64: 128, 32>}, {pipeline_mode = #tpu.pipeline_mode<synchronous>, transform_indices = @transform_6, window_bounds = array<i64: 1, 32>}, {transform_indices = @transform_7, window_bounds = array<i64: 8, 32>}]} {
    %c0 = arith.constant 0 : index
    %c0_0 = arith.constant 0 : index
    %0 = vector.load %arg1[%c0, %c0_0] : memref<8x32xf32, #tpu.memory_space<vmem>>, vector<8x32xf32>
    %c0_1 = arith.constant 0 : index
    %c0_2 = arith.constant 0 : index
    %1 = vector.load %arg2[%c0_1, %c0_2] : memref<32x128xf32, #tpu.memory_space<vmem>>, vector<32x128xf32>
    %cst = arith.constant dense<0.000000e+00> : vector<8x128xf32>
    %2 = tpu.matmul %0, %1, %cst {dimension_numbers = #tpu.dot_dimension_numbers<[1], [0], [0], [1], [0, 0, 1, 1], [], []>} : vector<8x32xf32>, vector<32x128xf32>, vector<8x128xf32> -> vector<8x128xf32>
    %c0_3 = arith.constant 0 : index
    %c0_4 = arith.constant 0 : index
    %3 = vector.load %arg3[%c0_3, %c0_4] : memref<1x128xf32, #tpu.memory_space<vmem>>, vector<1x128xf32>
    %4 = vector.broadcast %3 : vector<1x128xf32> to vector<8x128xf32>
    %5 = arith.addf %2, %4 : vector<8x128xf32>
    %cst_5 = arith.constant dense<0.000000e+00> : vector<8xf32>
    %6 = vector.multi_reduction <add>, %5, %cst_5 [1] : vector<8x128xf32> to vector<8xf32>
    %7 = vector.shape_cast %6 : vector<8xf32> to vector<8x1xf32>
    %cst_6 = arith.constant 1.280000e+02 : f32
    %8 = vector.broadcast %cst_6 : f32 to vector<8x1xf32>
    %9 = arith.divf %7, %8 : vector<8x1xf32>
    %10 = vector.broadcast %9 : vector<8x1xf32> to vector<8x128xf32>
    %11 = arith.subf %5, %10 : vector<8x128xf32>
    %12 = arith.mulf %11, %11 : vector<8x128xf32>
    %cst_7 = arith.constant dense<0.000000e+00> : vector<8xf32>
    %13 = vector.multi_reduction <add>, %12, %cst_7 [1] : vector<8x128xf32> to vector<8xf32>
    %14 = vector.shape_cast %13 : vector<8xf32> to vector<8x1xf32>
    %cst_8 = arith.constant 1.280000e+02 : f32
    %15 = vector.broadcast %cst_8 : f32 to vector<8x1xf32>
    %16 = arith.divf %14, %15 : vector<8x1xf32>
    %cst_9 = arith.constant 9.99999974E-6 : f32
    %17 = vector.broadcast %cst_9 : f32 to vector<8x1xf32>
    %18 = arith.addf %16, %17 : vector<8x1xf32>
    %19 = math.rsqrt %18 : vector<8x1xf32>
    %20 = vector.broadcast %19 : vector<8x1xf32> to vector<8x128xf32>
    %21 = arith.mulf %11, %20 : vector<8x128xf32>
    %c0_10 = arith.constant 0 : index
    %c0_11 = arith.constant 0 : index
    %22 = vector.load %arg4[%c0_10, %c0_11] : memref<1x128xf32, #tpu.memory_space<vmem>>, vector<1x128xf32>
    %23 = vector.broadcast %22 : vector<1x128xf32> to vector<8x128xf32>
    %24 = arith.mulf %21, %23 : vector<8x128xf32>
    %c0_12 = arith.constant 0 : index
    %c0_13 = arith.constant 0 : index
    %25 = vector.load %arg5[%c0_12, %c0_13] : memref<1x128xf32, #tpu.memory_space<vmem>>, vector<1x128xf32>
    %26 = vector.broadcast %25 : vector<1x128xf32> to vector<8x128xf32>
    %27 = arith.addf %24, %26 : vector<8x128xf32>
    %cst_14 = arith.constant 0.707106769 : f32
    %28 = vector.broadcast %cst_14 : f32 to vector<8x128xf32>
    %29 = arith.mulf %27, %28 : vector<8x128xf32>
    %30 = math.absf %29 : vector<8x128xf32>
    %cst_15 = arith.constant 0.327591091 : f32
    %31 = vector.broadcast %cst_15 : f32 to vector<8x128xf32>
    %32 = arith.mulf %31, %30 : vector<8x128xf32>
    %cst_16 = arith.constant 1.000000e+00 : f32
    %33 = vector.broadcast %cst_16 : f32 to vector<8x128xf32>
    %34 = arith.addf %33, %32 : vector<8x128xf32>
    %cst_17 = arith.constant 1.000000e+00 : f32
    %35 = vector.broadcast %cst_17 : f32 to vector<8x128xf32>
    %36 = arith.divf %35, %34 : vector<8x128xf32>
    %cst_18 = arith.constant 0.53070271 : f32
    %37 = vector.broadcast %cst_18 : f32 to vector<8x128xf32>
    %38 = arith.mulf %36, %37 : vector<8x128xf32>
    %cst_19 = arith.constant -0.72657603 : f32
    %39 = vector.broadcast %cst_19 : f32 to vector<8x128xf32>
    %40 = arith.addf %39, %38 : vector<8x128xf32>
    %41 = arith.mulf %36, %40 : vector<8x128xf32>
    %cst_20 = arith.constant 0.710706889 : f32
    %42 = vector.broadcast %cst_20 : f32 to vector<8x128xf32>
    %43 = arith.addf %42, %41 : vector<8x128xf32>
    %44 = arith.mulf %36, %43 : vector<8x128xf32>
    %cst_21 = arith.constant -0.142248362 : f32
    %45 = vector.broadcast %cst_21 : f32 to vector<8x128xf32>
    %46 = arith.addf %45, %44 : vector<8x128xf32>
    %47 = arith.mulf %36, %46 : vector<8x128xf32>
    %cst_22 = arith.constant 0.127414793 : f32
    %48 = vector.broadcast %cst_22 : f32 to vector<8x128xf32>
    %49 = arith.addf %48, %47 : vector<8x128xf32>
    %50 = arith.mulf %36, %49 : vector<8x128xf32>
    %cst_23 = arith.constant 0.000000e+00 : f32
    %51 = vector.broadcast %cst_23 : f32 to vector<8x128xf32>
    %52 = arith.subf %51, %29 : vector<8x128xf32>
    %53 = arith.mulf %52, %29 : vector<8x128xf32>
    %54 = math.exp %53 : vector<8x128xf32>
    %55 = arith.mulf %50, %54 : vector<8x128xf32>
    %cst_24 = arith.constant 0.000000e+00 : f32
    %56 = vector.broadcast %cst_24 : f32 to vector<8x128xf32>
    %57 = arith.cmpf oge, %27, %56 : vector<8x128xf32>
    %cst_25 = arith.constant 1.000000e+00 : f32
    %58 = vector.broadcast %cst_25 : f32 to vector<8x128xf32>
    %59 = arith.subf %58, %55 : vector<8x128xf32>
    %60 = arith.select %57, %59, %55 : vector<8x128xi1>, vector<8x128xf32>
    %61 = arith.mulf %27, %60 : vector<8x128xf32>
    %c0_26 = arith.constant 0 : index
    %c0_27 = arith.constant 0 : index
    %62 = vector.load %arg6[%c0_26, %c0_27] : memref<128x32xf32, #tpu.memory_space<vmem>>, vector<128x32xf32>
    %cst_28 = arith.constant dense<0.000000e+00> : vector<8x32xf32>
    %63 = tpu.matmul %61, %62, %cst_28 {dimension_numbers = #tpu.dot_dimension_numbers<[1], [0], [0], [1], [0, 0, 1, 1], [], []>} : vector<8x128xf32>, vector<128x32xf32>, vector<8x32xf32> -> vector<8x32xf32>
    %c0_29 = arith.constant 0 : index
    %c0_30 = arith.constant 0 : index
    %64 = vector.load %arg7[%c0_29, %c0_30] : memref<1x32xf32, #tpu.memory_space<vmem>>, vector<1x32xf32>
    %65 = vector.broadcast %64 : vector<1x32xf32> to vector<8x32xf32>
    %66 = arith.addf %63, %65 : vector<8x32xf32>
    %67 = arith.negf %66 : vector<8x32xf32>
    %68 = math.exp %67 : vector<8x32xf32>
    %cst_31 = arith.constant 1.000000e+00 : f32
    %69 = vector.broadcast %cst_31 : f32 to vector<8x32xf32>
    %70 = arith.addf %69, %68 : vector<8x32xf32>
    %71 = arith.divf %69, %70 : vector<8x32xf32>
    %c0_32 = arith.constant 0 : index
    %c0_33 = arith.constant 0 : index
    %72 = vector.load %arg8[%c0_32, %c0_33] : memref<8x32xf32, #tpu.memory_space<vmem>>, vector<8x32xf32>
    tpu.vector_store %arg8[%c0_32, %c0_33], %71 {strides = array<i32>} : memref<8x32xf32, #tpu.memory_space<vmem>>, vector<8x32xf32>,
    return
  }
  func.func @transform_0(%arg0: i32) -> (i32, i32) {
    %c0_i32 = arith.constant 0 : i32
    %c0_i32_0 = arith.constant 0 : i32
    return %arg0, %c0_i32 : i32, i32
  }
  func.func @transform_1(%arg0: i32) -> (i32, i32) {
    %c0_i32 = arith.constant 0 : i32
    %c0_i32_0 = arith.constant 0 : i32
    %c0_i32_1 = arith.constant 0 : i32
    return %c0_i32, %c0_i32_0 : i32, i32
  }
  func.func @transform_2(%arg0: i32) -> (i32, i32) {
    %c0_i32 = arith.constant 0 : i32
    %c0_i32_0 = arith.constant 0 : i32
    %c0_i32_1 = arith.constant 0 : i32
    return %c0_i32, %c0_i32_0 : i32, i32
  }
  func.func @transform_3(%arg0: i32) -> (i32, i32) {
    %c0_i32 = arith.constant 0 : i32
    %c0_i32_0 = arith.constant 0 : i32
    %c0_i32_1 = arith.constant 0 : i32
    return %c0_i32, %c0_i32_0 : i32, i32
  }
  func.func @transform_4(%arg0: i32) -> (i32, i32) {
    %c0_i32 = arith.constant 0 : i32
    %c0_i32_0 = arith.constant 0 : i32
    %c0_i32_1 = arith.constant 0 : i32
    return %c0_i32, %c0_i32_0 : i32, i32
  }
  func.func @transform_5(%arg0: i32) -> (i32, i32) {
    %c0_i32 = arith.constant 0 : i32
    %c0_i32_0 = arith.constant 0 : i32
    %c0_i32_1 = arith.constant 0 : i32
    return %c0_i32, %c0_i32_0 : i32, i32
  }
  func.func @transform_6(%arg0: i32) -> (i32, i32) {
    %c0_i32 = arith.constant 0 : i32
    %c0_i32_0 = arith.constant 0 : i32
    %c0_i32_1 = arith.constant 0 : i32
    return %c0_i32, %c0_i32_0 : i32, i32
  }
  func.func @transform_7(%arg0: i32) -> (i32, i32) {
    %c0_i32 = arith.constant 0 : i32
    %c0_i32_0 = arith.constant 0 : i32
    return %arg0, %c0_i32 : i32, i32
  }
}

</mosaic_0001>

<llo_original>
// kernel: tpu_custom_call.1
$region0: #{tpu_custom_call.1}
  #allocation0 [shape = 'u32[]', space=smem, size = 0x4, offset = 0x4, fixed_abs, tag = 'smem constant byte address 0x4 - core index']
  #allocation1 [shape = 'u32[144,128]{1,0:T(1,128)}', space=vmem, size = 0x12000, scoped, tag = 'internal scratch']
  %s0 = inlined_call_operand.vmem [shape: f32[16,32], index: 0, kind: input, shape index: {}]
  %s1 = inlined_call_operand.vmem [shape: f32[32,128], index: 1, kind: input, shape index: {}]
  %s2 = inlined_call_operand.vmem [shape: f32[1,128], index: 2, kind: input, shape index: {}]
  %s3 = inlined_call_operand.vmem [shape: f32[1,128], index: 3, kind: input, shape index: {}]
  %s4 = inlined_call_operand.vmem [shape: f32[1,128], index: 4, kind: input, shape index: {}]
  %s5 = inlined_call_operand.vmem [shape: f32[128,32], index: 5, kind: input, shape index: {}]
  %s6 = inlined_call_operand.vmem [shape: f32[1,32], index: 6, kind: input, shape index: {}]
  %s7 = inlined_call_operand.hbm [shape: f32[16,32], index: 7, kind: output, shape index: {}]
  %s8 = sld [smem:[#allocation0]]
  $region61: #{tpu_custom_call.1} parent=0
    _
  %s10 = ssub.s32 1, %s8
  %s11 = scalar_select 0, %s10, %s8
  $region1: #{tpu_custom_call.1} parent=0
    #allocation2 [shape = 'u8[8192]{0}', space=vmem, size = 0x2000, scoped, tag = 'output window, operand 0']
    #allocation3 [shape = 's32[2]{0}', space=sflag, size = 0x8, scoped, tag = 'scoped memory for tpu_custom_call.1']
    %12 = vsyncpa [#allocation3], 0
    %s13 = scalar_lea.sflag [#allocation3], 1
    %14 = vsyncpa %s13, 0
    loop: start=0, step=1, limit=4
    $region2: #{tpu_custom_call.1} parent=1 // loop_pre_header
      _
    $region3: #{tpu_custom_call.1} parent=1 // loop_header
      %s16 = sphi 0, %s20
      %p17 = scmp.ge.s32.totalorder %s16, 4
      %s26 = sphi 0, %s28
      %s29 = sphi 0, %s26
      %s30 = sphi 0, %s29
      %s46 = sphi 0, %s30
      %s50 = sphi 0, %s50
      %s52 = sphi 0, %s50
      %s53 = sphi 0, %s52
      %s67 = sphi 0, %s53
      %s71 = sphi 0, %s71
      %s73 = sphi 0, %s71
      %s74 = sphi 0, %s73
      %s88 = sphi 0, %s74
      %s92 = sphi 0, %s92
      %s94 = sphi 0, %s92
      %s95 = sphi 0, %s94
      %s109 = sphi 0, %s95
      %s113 = sphi 0, %s113
      %s115 = sphi 0, %s113
      %s116 = sphi 0, %s115
      %s130 = sphi 0, %s116
      %s134 = sphi 0, %s134
      %s136 = sphi 0, %s134
      %s137 = sphi 0, %s136
      %s151 = sphi 0, %s137
      %s155 = sphi 0, %s155
      %s157 = sphi 0, %s155
      %s158 = sphi 0, %s157
      %s172 = sphi 0, %s158
      %s178 = sphi 0, %s180
      %s181 = sphi 0, %s178
      %s182 = sphi 0, %s181
      %s198 = sphi 0, %s182
    $region4: #{tpu_custom_call.1} parent=1 // loop_header_branch
      %19 = sbr.rel (%p17) target = $region8
    $region5: #{tpu_custom_call.1} parent=1 // loop_body
      %s21 = ssub.s32 %s16, 1
      %s22 = ssub.s32 %s16, 2
      %s23 = sadd.s32 %s16, 1
      %s24 = ssub.s32 %s16, %s23
      %p25 = scmp.eq.s32.totalorder %s24, 0
      %s27 = sadd.s32 %s26, 1
      %s28 = scalar_select %p25, %s26, %s27
      %p31 = pneg %p25
      %p32 = scmp.eq.s32.totalorder %s16, 1
      %p33 = por %p31, %p32
      %p34 = scmp.ne.s32.totalorder %s26, %s29
      %p35 = scmp.eq.s32.totalorder %s16, 0
      %p36 = por %p34, %p35
      %p37 = scmp.ne.s32.totalorder %s26, %s29
      %p38 = scmp.eq.s32.totalorder %s21, 1
      %p39 = por %p37, %p38
      %p40 = scmp.ne.s32.totalorder %s29, %s30
      %p41 = scmp.eq.s32.totalorder %s21, 0
      %p42 = por %p40, %p41
      %p43 = scmp.ne.s32.totalorder %s29, %s30
      %p44 = scmp.eq.s32.totalorder %s22, 1
      %p45 = por %p43, %p44
      %p47 = scmp.ne.s32.totalorder %s30, %s46
      %p48 = scmp.eq.s32.totalorder %s22, 0
      %p49 = por %p47, %p48
      %s51 = sadd.s32 %s50, 1
      %p54 = scmp.eq.s32.totalorder %s16, 1
      %p55 = scmp.ne.s32.totalorder %s50, %s52
      %p56 = scmp.eq.s32.totalorder %s16, 0
      %p57 = por %p55, %p56
      %p58 = scmp.ne.s32.totalorder %s50, %s52
      %p59 = scmp.eq.s32.totalorder %s21, 1
      %p60 = por %p58, %p59
      %p61 = scmp.ne.s32.totalorder %s52, %s53
      %p62 = scmp.eq.s32.totalorder %s21, 0
      %p63 = por %p61, %p62
      %p64 = scmp.ne.s32.totalorder %s52, %s53
      %p65 = scmp.eq.s32.totalorder %s22, 1
      %p66 = por %p64, %p65
      %p68 = scmp.ne.s32.totalorder %s53, %s67
      %p69 = scmp.eq.s32.totalorder %s22, 0
      %p70 = por %p68, %p69
      %s72 = sadd.s32 %s71, 1
      %p75 = scmp.eq.s32.totalorder %s16, 1
      %p76 = scmp.ne.s32.totalorder %s71, %s73
      %p77 = scmp.eq.s32.totalorder %s16, 0
      %p78 = por %p76, %p77
      %p79 = scmp.ne.s32.totalorder %s71, %s73
      %p80 = scmp.eq.s32.totalorder %s21, 1
      %p81 = por %p79, %p80
      %p82 = scmp.ne.s32.totalorder %s73, %s74
      %p83 = scmp.eq.s32.totalorder %s21, 0
      %p84 = por %p82, %p83
      %p85 = scmp.ne.s32.totalorder %s73, %s74
      %p86 = scmp.eq.s32.totalorder %s22, 1
      %p87 = por %p85, %p86
      %p89 = scmp.ne.s32.totalorder %s74, %s88
      %p90 = scmp.eq.s32.totalorder %s22, 0
      %p91 = por %p89, %p90
      %s93 = sadd.s32 %s92, 1
      %p96 = scmp.eq.s32.totalorder %s16, 1
      %p97 = scmp.ne.s32.totalorder %s92, %s94
      %p98 = scmp.eq.s32.totalorder %s16, 0
      %p99 = por %p97, %p98
      %p100 = scmp.ne.s32.totalorder %s92, %s94
      %p101 = scmp.eq.s32.totalorder %s21, 1
      %p102 = por %p100, %p101
      %p103 = scmp.ne.s32.totalorder %s94, %s95
      %p104 = scmp.eq.s32.totalorder %s21, 0
      %p105 = por %p103, %p104
      %p106 = scmp.ne.s32.totalorder %s94, %s95
      %p107 = scmp.eq.s32.totalorder %s22, 1
      %p108 = por %p106, %p107
      %p110 = scmp.ne.s32.totalorder %s95, %s109
      %p111 = scmp.eq.s32.totalorder %s22, 0
      %p112 = por %p110, %p111
      %s114 = sadd.s32 %s113, 1
      %p117 = scmp.eq.s32.totalorder %s16, 1
      %p118 = scmp.ne.s32.totalorder %s113, %s115
      %p119 = scmp.eq.s32.totalorder %s16, 0
      %p120 = por %p118, %p119
      %p121 = scmp.ne.s32.totalorder %s113, %s115
      %p122 = scmp.eq.s32.totalorder %s21, 1
      %p123 = por %p121, %p122
      %p124 = scmp.ne.s32.totalorder %s115, %s116
      %p125 = scmp.eq.s32.totalorder %s21, 0
      %p126 = por %p124, %p125
      %p127 = scmp.ne.s32.totalorder %s115, %s116
      %p128 = scmp.eq.s32.totalorder %s22, 1
      %p129 = por %p127, %p128
      %p131 = scmp.ne.s32.totalorder %s116, %s130
      %p132 = scmp.eq.s32.totalorder %s22, 0
      %p133 = por %p131, %p132
      %s135 = sadd.s32 %s134, 1
      %p138 = scmp.eq.s32.totalorder %s16, 1
      %p139 = scmp.ne.s32.totalorder %s134, %s136
      %p140 = scmp.eq.s32.totalorder %s16, 0
      %p141 = por %p139, %p140
      %p142 = scmp.ne.s32.totalorder %s134, %s136
      %p143 = scmp.eq.s32.totalorder %s21, 1
      %p144 = por %p142, %p143
      %p145 = scmp.ne.s32.totalorder %s136, %s137
      %p146 = scmp.eq.s32.totalorder %s21, 0
      %p147 = por %p145, %p146
      %p148 = scmp.ne.s32.totalorder %s136, %s137
      %p149 = scmp.eq.s32.totalorder %s22, 1
      %p150 = por %p148, %p149
      %p152 = scmp.ne.s32.totalorder %s137, %s151
      %p153 = scmp.eq.s32.totalorder %s22, 0
      %p154 = por %p152, %p153
      %s156 = sadd.s32 %s155, 1
      %p159 = scmp.eq.s32.totalorder %s16, 1
      %p160 = scmp.ne.s32.totalorder %s155, %s157
      %p161 = scmp.eq.s32.totalorder %s16, 0
      %p162 = por %p160, %p161
      %p163 = scmp.ne.s32.totalorder %s155, %s157
      %p164 = scmp.eq.s32.totalorder %s21, 1
      %p165 = por %p163, %p164
      %p166 = scmp.ne.s32.totalorder %s157, %s158
      %p167 = scmp.eq.s32.totalorder %s21, 0
      %p168 = por %p166, %p167
      %p169 = scmp.ne.s32.totalorder %s157, %s158
      %p170 = scmp.eq.s32.totalorder %s22, 1
      %p171 = por %p169, %p170
      %p173 = scmp.ne.s32.totalorder %s158, %s172
      %p174 = scmp.eq.s32.totalorder %s22, 0
      %p175 = por %p173, %p174
      %s176 = ssub.s32 %s16, %s23
      %p177 = scmp.eq.s32.totalorder %s176, 0
      %s179 = sadd.s32 %s178, 1
      %s180 = scalar_select %p177, %s178, %s179
      %p183 = pneg %p177
      %p184 = scmp.eq.s32.totalorder %s16, 1
      %p185 = por %p183, %p184
      %p186 = scmp.ne.s32.totalorder %s178, %s181
      %p187 = scmp.eq.s32.totalorder %s16, 0
      %p188 = por %p186, %p187
      %p189 = scmp.ne.s32.totalorder %s178, %s181
      %p190 = scmp.eq.s32.totalorder %s21, 1
      %p191 = por %p189, %p190
      %p192 = scmp.ne.s32.totalorder %s181, %s182
      %p193 = scmp.eq.s32.totalorder %s21, 0
      %p194 = por %p192, %p193
      %p195 = scmp.ne.s32.totalorder %s181, %s182
      %p196 = scmp.eq.s32.totalorder %s22, 1
      %p197 = por %p195, %p196
      %p199 = scmp.ne.s32.totalorder %s182, %s198
      %p200 = scmp.eq.s32.totalorder %s22, 0
      %p201 = por %p199, %p200
      %p202 = scmp.le.s32.totalorder 1, %s16
      %p203 = scmp.lt.s32.totalorder %s16, 3
      %p204 = pnand %p202, %p203
      %p205 = pneg %p204
      // Predicated region
      $region9: #{tpu_custom_call.1} parent=5 // pred_check
        _
      $region10: #{tpu_custom_call.1} parent=5 // pred_check_branch
        %207 = sbr.rel (%p204) target = $region12
      $region11: #{tpu_custom_call.1} parent=5 // pred_region
        %s208 = ssub.s32 %s16, 1
        // Predicated region
        $region13: #{tpu_custom_call.1} parent=11 // pred_check
          %p209 = pneg %p63
        $region14: #{tpu_custom_call.1} parent=11 // pred_check_branch
          %211 = sbr.rel (%p209) target = $region16
        $region15: #{tpu_custom_call.1} parent=11 // pred_region
          _
        $region16: #{tpu_custom_call.1} parent=11 // pred_fallthru
          _
        // Predicated region
        $region17: #{tpu_custom_call.1} parent=11 // pred_check
          %p212 = pneg %p84
        $region18: #{tpu_custom_call.1} parent=11 // pred_check_branch
          %214 = sbr.rel (%p212) target = $region20
        $region19: #{tpu_custom_call.1} parent=11 // pred_region
          _
        $region20: #{tpu_custom_call.1} parent=11 // pred_fallthru
          _
        // Predicated region
        $region21: #{tpu_custom_call.1} parent=11 // pred_check
          %p215 = pneg %p105
        $region22: #{tpu_custom_call.1} parent=11 // pred_check_branch
          %217 = sbr.rel (%p215) target = $region24
        $region23: #{tpu_custom_call.1} parent=11 // pred_region
          _
        $region24: #{tpu_custom_call.1} parent=11 // pred_fallthru
          _
        // Predicated region
        $region25: #{tpu_custom_call.1} parent=11 // pred_check
          %p218 = pneg %p126
        $region26: #{tpu_custom_call.1} parent=11 // pred_check_branch
          %220 = sbr.rel (%p218) target = $region28
        $region27: #{tpu_custom_call.1} parent=11 // pred_region
          _
        $region28: #{tpu_custom_call.1} parent=11 // pred_fallthru
          _
        // Predicated region
        $region29: #{tpu_custom_call.1} parent=11 // pred_check
          %p221 = pneg %p147
        $region30: #{tpu_custom_call.1} parent=11 // pred_check_branch
          %223 = sbr.rel (%p221) target = $region32
        $region31: #{tpu_custom_call.1} parent=11 // pred_region
          _
        $region32: #{tpu_custom_call.1} parent=11 // pred_fallthru
          _
        // Predicated region
        $region33: #{tpu_custom_call.1} parent=11 // pred_check
          %p224 = pneg %p168
        $region34: #{tpu_custom_call.1} parent=11 // pred_check_branch
          %226 = sbr.rel (%p224) target = $region36
        $region35: #{tpu_custom_call.1} parent=11 // pred_region
          _
        $region36: #{tpu_custom_call.1} parent=11 // pred_fallthru
          _
      $region12: #{tpu_custom_call.1} parent=5 // pred_fallthru
        _
      %p227 = scmp.lt.s32.totalorder %s16, 2
      // Predicated region
      $region37: #{tpu_custom_call.1} parent=5 // pred_check
        %p228 = pneg %p227
      $region38: #{tpu_custom_call.1} parent=5 // pred_check_branch
        %230 = sbr.rel (%p228) target = $region40
      $region39: #{tpu_custom_call.1} parent=5 // pred_region
        // Predicated region
        $region41: #{tpu_custom_call.1} parent=39 // pred_check
          %p231 = pneg %p36
        $region42: #{tpu_custom_call.1} parent=39 // pred_check_branch
          %233 = sbr.rel (%p231) target = $region44
        $region43: #{tpu_custom_call.1} parent=39 // pred_region
          %p234 = scmp.lt.s32.totalorder %s16, 1
          %s235 = scalar_select %p234, %s16, 1
          %s236 = smul.addr %s235, 8
          %s237 = scalar_lea.vmem %s0, %s236
        $region44: #{tpu_custom_call.1} parent=39 // pred_fallthru
          _
      $region40: #{tpu_custom_call.1} parent=5 // pred_fallthru
        _
      %p238 = scmp.le.s32.totalorder 1, %s16
      %p239 = scmp.lt.s32.totalorder %s16, 3
      %p240 = pnand %p238, %p239
      %p241 = pneg %p240
      // Predicated region
      $region45: #{tpu_custom_call.1} parent=5 // pred_check
        _
      $region46: #{tpu_custom_call.1} parent=5 // pred_check_branch
        %243 = sbr.rel (%p240) target = $region48
      $region47: #{tpu_custom_call.1} parent=5 // pred_region
        %s244 = ssub.s32 %s16, 1
        %p245 = scmp.lt.s32.totalorder %s21, 1
        %s246 = scalar_select %p245, %s21, 1
        %s247 = smul.addr %s246, 8
        %s248 = scalar_lea.vmem %s0, %s247
        %p249 = pneg %p42
        %p250 = pneg %p39
        %p251 = pneg %p63
        %p252 = pneg %p60
        %p253 = pneg %p84
        %p254 = pneg %p81
        %p255 = pneg %p105
        %p256 = pneg %p102
        %p257 = pneg %p126
        %p258 = pneg %p123
        %p259 = pneg %p147
        %p260 = pneg %p144
        %p261 = pneg %p168
        %p262 = pneg %p165
        %p263 = pneg %p194
        %p264 = pneg %p191
        %s265 = sand.u32 %s181, 1
        %s266 = scalar_lea.sflag [#allocation3], %s265
        %s267 = sand.u32 %s181, 1
        %s268 = smul.addr %s267, 8
        %s269 = scalar_lea.vmem [#allocation2], %s268
        %p270 = scmp.lt.s32.totalorder %s21, 1
        %s271 = scalar_select %p270, %s21, 1
        %s272 = smul.addr %s271, 8
        %s273 = scalar_lea.vmem %s0, %s272
        %v274 = vld [vmem:[%s273] sm:$0xff]
        %v275 = vld [vmem:[%s1] sm:$0xff]
        %v276 = vld [vmem:[%s1 + $0x8] sm:$0xff]
        %v277 = vld [vmem:[%s1 + $0x10] sm:$0xff]
        %v278 = vld [vmem:[%s1 + $0x18] sm:$0xff]
        %v279 = vld [vmem:[%s2] sm:$0x1]
        %v281 = vlaneseq
        %v282 = vshrl.u32 %v281, 7
        %v283 = vsub.s32 0, %v282
        %v284 = vrot.slane %v279, %v283
        %vm286 = vcmask 261120
        %v288 = vsel %vm286, %v274, 0
        %290 = vmatprep.subr.mxu0 0.0
        %291 = vmatpush1.msra.mxu0 %v275
        %292 = vmatprep.subr.mxu0 0.0
        %293 = vmatpush1.msra.mxu0 %v276
        %294 = vmatprep.subr.mxu0 0.0
        %295 = vmatpush1.msra.mxu0 %v277
        %296 = vmatprep.subr.mxu0 0.0
        %297 = vmatpush1.msra.mxu0 %v278
        %298 = vmatprep.subr.mxu0 0.0
        %299 = vmatpush1.msra.mxu0 0.0
        %300 = vmatprep.subr.mxu0 0.0
        %301 = vmatpush1.msra.mxu0 0.0
        %302 = vmatprep.subr.mxu0 0.0
        %303 = vmatpush1.msra.mxu0 0.0
        %304 = vmatprep.subr.mxu0 0.0
        %305 = vmatpush1.msra.mxu0 0.0
        %306 = vmatprep.subr.mxu0 0.0
        %307 = vmatpush1.msra.mxu0 0.0
        %308 = vmatprep.subr.mxu0 0.0
        %309 = vmatpush1.msra.mxu0 0.0
        %310 = vmatprep.subr.mxu0 0.0
        %311 = vmatpush1.msra.mxu0 0.0
        %312 = vmatprep.subr.mxu0 0.0
        %313 = vmatpush1.msra.mxu0 0.0
        %314 = vmatprep.subr.mxu0 0.0
        %315 = vmatpush1.msra.mxu0 0.0
        %316 = vmatprep.subr.mxu0 0.0
        %317 = vmatpush1.msra.mxu0 0.0
        %318 = vmatprep.subr.mxu0 0.0
        %319 = vmatpush1.msra.mxu0 0.0
        %320 = vmatprep.subr.mxu0 0.0
        %321 = vmatpush1.msra.mxu0 0.0
        %322 = vmatprep.subr.mxu0 0.0
        %323 = vmatpush1.msra.mxu0 0.0
        %324 = vmatprep.subr.mxu0 0.0
        %325 = vmatpush1.msra.mxu0 0.0
        %326 = vmatprep.subr.mxu0 0.0
        %327 = vmatpush1.msra.mxu0 0.0
        %328 = vmatprep.subr.mxu0 0.0
        %329 = vmatpush1.msra.mxu0 0.0
        %330 = vmatprep.subr.mxu0 0.0
        %331 = vmatpush1.msra.mxu0 0.0
        %332 = vmatprep.subr.mxu0 0.0
        %333 = vmatpush1.msra.mxu0 0.0
        %334 = vmatprep.subr.mxu0 0.0
        %335 = vmatpush1.msra.mxu0 0.0
        %336 = vmatprep.subr.mxu0 0.0
        %337 = vmatpush1.msra.mxu0 0.0
        %338 = vmatprep.subr.mxu0 0.0
        %339 = vmatpush1.msra.mxu0 0.0
        %340 = vmatprep.subr.mxu0 0.0
        %341 = vmatpush1.msra.mxu0 0.0
        %342 = vmatprep.subr.mxu0 0.0
        %343 = vmatpush1.msra.mxu0 0.0
        %344 = vmatprep.subr.mxu0 0.0
        %345 = vmatpush1.msra.mxu0 0.0
        %346 = vmatprep.subr.mxu0 0.0
        %347 = vmatpush1.msra.mxu0 0.0
        %348 = vmatprep.subr.mxu0 0.0
        %349 = vmatpush1.msra.mxu0 0.0
        %350 = vmatprep.subr.mxu0 0.0
        %351 = vmatpush1.msra.mxu0 0.0
        %352 = vmatprep.subr.mxu0 0.0
        %353 = vmatpush1.msra.mxu0 0.0
        %354 = vmatprep.mubr.f32.mxu0 0.0
        %355 = vmatmul.mubr.f32.gmra.mrb[0].mxu0 %v288
        %v356 = vpop.f32.mrb[0].mxu0
        %v357 = vadd.f32 %v284, %v356
        %v358 = vpop.f32.mrb[0].mxu0
        %359 = vdwg.mxu0
        %360 = vadd.xlane.f32.xlu0 %v357
        %v361 = vpop.xlane.xlu0 %360
        %v362 = vrcp.pop 128.0
        %v363 = vmul.f32 %v361, %v362
        %v364 = vsub.f32 %v357, %v363
        %v365 = vmul.f32 %v364, %v364
        %366 = vadd.xlane.f32.xlu0 %v365
        %v367 = vpop.xlane.xlu0 %366
        %v368 = vmul.f32 %v367, %v362
        %v369 = vadd.f32 %v368, 1e-05
        %v370 = vrsqrt.pop %v369
        %v371 = vmul.f32 %v364, %v370
        %v372 = vld [vmem:[%s3] sm:$0x1]
        %v374 = vlaneseq
        %v375 = vshrl.u32 %v374, 7
        %v376 = vsub.s32 0, %v375
        %v377 = vrot.slane %v372, %v376
        %v379 = vmul.f32 %v371, %v377
        %v380 = vld [vmem:[%s4] sm:$0x1]
        %v382 = vlaneseq
        %v383 = vshrl.u32 %v382, 7
        %v384 = vsub.s32 0, %v383
        %v385 = vrot.slane %v380, %v384
        %v387 = vadd.f32 %v379, %v385
        %v388 = vmul.f32 %v387, 0.70710677
        %v389 = vand.u32 2147483647, %v388
        %v390 = vmul.f32 %v389, 0.3275911
        %v391 = vadd.f32 %v390, 1.0
        %v392 = vrcp.pop %v391
        %v393 = vmul.f32 1.0, %v392
        %v394 = vmul.f32 %v393, 0.5307027
        %v395 = vadd.f32 %v394, -0.72657603
        %v396 = vmul.f32 %v393, %v395
        %v397 = vadd.f32 %v396, 0.7107069
        %v398 = vmul.f32 %v393, %v397
        %v399 = vadd.f32 %v398, -0.14224836
        %v400 = vmul.f32 %v393, %v399
        %v401 = vadd.f32 %v400, 0.1274148
        %v402 = vmul.f32 %v393, %v401
        %v403 = vsub.f32 0.0, %v388
        %v404 = vmul.f32 %v403, %v388
        %v405 = vmul.f32 %v404, 1.442695
        %v406 = vpow.pop %v405
        %v407 = vmul.f32 %v402, %v406
        %vm408 = vcmp.ge.f32.partialorder %v387, 0.0
        %v409 = vsub.f32 1.0, %v407
        %v410 = vsel %vm408, %v409, %v407
        %v411 = vmul.f32 %v387, %v410
        %v412 = vld [vmem:[%s5] sm:$0xff]
        %v413 = vld [vmem:[%s5 + $0x8] sm:$0xff]
        %v414 = vld [vmem:[%s5 + $0x10] sm:$0xff]
        %v415 = vld [vmem:[%s5 + $0x18] sm:$0xff]
        %v416 = vld [vmem:[%s5 + $0x20] sm:$0xff]
        %v417 = vld [vmem:[%s5 + $0x28] sm:$0xff]
        %v418 = vld [vmem:[%s5 + $0x30] sm:$0xff]
        %v419 = vld [vmem:[%s5 + $0x38] sm:$0xff]
        %v420 = vld [vmem:[%s5 + $0x40] sm:$0xff]
        %v421 = vld [vmem:[%s5 + $0x48] sm:$0xff]
        %v422 = vld [vmem:[%s5 + $0x50] sm:$0xff]
        %v423 = vld [vmem:[%s5 + $0x58] sm:$0xff]
        %v424 = vld [vmem:[%s5 + $0x60] sm:$0xff]
        %v425 = vld [vmem:[%s5 + $0x68] sm:$0xff]
        %v426 = vld [vmem:[%s5 + $0x70] sm:$0xff]
        %v427 = vld [vmem:[%s5 + $0x78] sm:$0xff]
        %v428 = vld [vmem:[%s6] sm:$0x1]
        %v430 = vlaneseq
        %v431 = vshrl.u32 %v430, 7
        %v432 = vsub.s32 0, %v431
        %v433 = vrot.slane %v428, %v432
        %435 = vmatprep.subr.mxu0 0.0
        %436 = vmatpush1.msra.mxu0 %v412
        %437 = vmatprep.subr.mxu0 0.0
        %438 = vmatpush1.msra.mxu0 %v413
        %439 = vmatprep.subr.mxu0 0.0
        %440 = vmatpush1.msra.mxu0 %v414
        %441 = vmatprep.subr.mxu0 0.0
        %442 = vmatpush1.msra.mxu0 %v415
        %443 = vmatprep.subr.mxu0 0.0
        %444 = vmatpush1.msra.mxu0 %v416
        %445 = vmatprep.subr.mxu0 0.0
        %446 = vmatpush1.msra.mxu0 %v417
        %447 = vmatprep.subr.mxu0 0.0
        %448 = vmatpush1.msra.mxu0 %v418
        %449 = vmatprep.subr.mxu0 0.0
        %450 = vmatpush1.msra.mxu0 %v419
        %451 = vmatprep.subr.mxu0 0.0
        %452 = vmatpush1.msra.mxu0 %v420
        %453 = vmatprep.subr.mxu0 0.0
        %454 = vmatpush1.msra.mxu0 %v421
        %455 = vmatprep.subr.mxu0 0.0
        %456 = vmatpush1.msra.mxu0 %v422
        %457 = vmatprep.subr.mxu0 0.0
        %458 = vmatpush1.msra.mxu0 %v423
        %459 = vmatprep.subr.mxu0 0.0
        %460 = vmatpush1.msra.mxu0 %v424
        %461 = vmatprep.subr.mxu0 0.0
        %462 = vmatpush1.msra.mxu0 %v425
        %463 = vmatprep.subr.mxu0 0.0
        %464 = vmatpush1.msra.mxu0 %v426
        %465 = vmatprep.subr.mxu0 0.0
        %466 = vmatpush1.msra.mxu0 %v427
        %467 = vmatprep.subr.mxu0 0.0
        %468 = vmatpush1.msra.mxu0 0.0
        %469 = vmatprep.subr.mxu0 0.0
        %470 = vmatpush1.msra.mxu0 0.0
        %471 = vmatprep.subr.mxu0 0.0
        %472 = vmatpush1.msra.mxu0 0.0
        %473 = vmatprep.subr.mxu0 0.0
        %474 = vmatpush1.msra.mxu0 0.0
        %475 = vmatprep.subr.mxu0 0.0
        %476 = vmatpush1.msra.mxu0 0.0
        %477 = vmatprep.subr.mxu0 0.0
        %478 = vmatpush1.msra.mxu0 0.0
        %479 = vmatprep.subr.mxu0 0.0
        %480 = vmatpush1.msra.mxu0 0.0
        %481 = vmatprep.subr.mxu0 0.0
        %482 = vmatpush1.msra.mxu0 0.0
        %483 = vmatprep.subr.mxu0 0.0
        %484 = vmatpush1.msra.mxu0 0.0
        %485 = vmatprep.subr.mxu0 0.0
        %486 = vmatpush1.msra.mxu0 0.0
        %487 = vmatprep.subr.mxu0 0.0
        %488 = vmatpush1.msra.mxu0 0.0
        %489 = vmatprep.subr.mxu0 0.0
        %490 = vmatpush1.msra.mxu0 0.0
        %491 = vmatprep.subr.mxu0 0.0
        %492 = vmatpush1.msra.mxu0 0.0
        %493 = vmatprep.subr.mxu0 0.0
        %494 = vmatpush1.msra.mxu0 0.0
        %495 = vmatprep.subr.mxu0 0.0
        %496 = vmatpush1.msra.mxu0 0.0
        %497 = vmatprep.subr.mxu0 0.0
        %498 = vmatpush1.msra.mxu0 0.0
        %499 = vmatprep.mubr.f32.mxu0 0.0
        %500 = vmatmul.mubr.f32.gmra.mrb[0].mxu0 %v411
        %v501 = vpop.f32.mrb[0].mxu0
        %v502 = vadd.f32 %v433, %v501
        %v503 = vpop.f32.mrb[0].mxu0
        %504 = vdwg.mxu0
        %v505 = vxor.u32 %v502, 2147483648
        %v506 = vmul.f32 %v505, 1.442695
        %v507 = vpow.pop %v506
        %v508 = vadd.f32 %v507, 1.0
        %v509 = vrcp.pop %v508
        %v510 = vmul.f32 1.0, %v509
        %511 = vst.msk [vmem:[%s269] sm:$0xff] %vm286, %v510
        %s512 = sand.u32 %s181, 1
        %s513 = scalar_lea.sflag [#allocation3], %s512
        %s514 = sand.u32 %s181, 1
        %s515 = smul.addr %s514, 8
        %s516 = scalar_lea.vmem [#allocation2], %s515
        // Predicated region
        $region49: #{tpu_custom_call.1} parent=47 // pred_check
          %p517 = pneg %p191
        $region50: #{tpu_custom_call.1} parent=47 // pred_check_branch
          %519 = sbr.rel (%p517) target = $region52
        $region51: #{tpu_custom_call.1} parent=47 // pred_region
          %s521 = ssub.s32 128, 128
          %522 = vsyncadd %s513, %s521
          %s523 = smul.addr %s21, 128
          %s524 = scalar_lea.hbm %s7, %s523
          %s526 = sshll.u32 %s516, 4
          %s527 = int_to_ptr.vmem [resolvable:$true] %s526
          %529 = dma.vmem_to_hbm [thread:$0]  %s527, 128, %s524, %s513
        $region52: #{tpu_custom_call.1} parent=47 // pred_fallthru
          _
      $region48: #{tpu_custom_call.1} parent=5 // pred_fallthru
        _
      %p530 = scmp.le.s32.totalorder 2, %s16
      // Predicated region
      $region53: #{tpu_custom_call.1} parent=5 // pred_check
        %p531 = pneg %p530
      $region54: #{tpu_custom_call.1} parent=5 // pred_check_branch
        %533 = sbr.rel (%p531) target = $region56
      $region55: #{tpu_custom_call.1} parent=5 // pred_region
        %s534 = ssub.s32 %s16, 2
        // Predicated region
        $region57: #{tpu_custom_call.1} parent=55 // pred_check
          %p535 = pneg %p197
        $region58: #{tpu_custom_call.1} parent=55 // pred_check_branch
          %537 = sbr.rel (%p535) target = $region60
        $region59: #{tpu_custom_call.1} parent=55 // pred_region
          %s538 = sand.u32 %s182, 1
          %s539 = scalar_lea.sflag [#allocation3], %s538
          %s540 = sand.u32 %s182, 1
          %s541 = smul.addr %s540, 8
          %s542 = scalar_lea.vmem [#allocation2], %s541
          %543 = dma.done %s539, 128
        $region60: #{tpu_custom_call.1} parent=55 // pred_fallthru
          _
      $region56: #{tpu_custom_call.1} parent=5 // pred_fallthru
        _
    $region6: #{tpu_custom_call.1} parent=1 // loop_footer
      %s20 = sadd.s32 1, %s16
    $region7: #{tpu_custom_call.1} parent=1 // loop_footer_branch
      %15 = sbr.rel target = $region3
    $region8: #{tpu_custom_call.1} parent=1 // loop_exit
      _
    %544 = vsyncpa [#allocation3], 1
    %s545 = scalar_lea.sflag [#allocation3], 1
    %546 = vsyncpa %s545, 1

// kernel: tpu_custom_call.1
$region0: #{tpu_custom_call.1}
  #allocation0 [shape = 'u32[]', space=smem, size = 0x4, offset = 0x4, fixed_abs, tag = 'smem constant byte address 0x4 - core index']
  #allocation1 [shape = 'u32[144,128]{1,0:T(1,128)}', space=vmem, size = 0x12000, scoped, tag = 'internal scratch']
  %s0 = inlined_call_operand.vmem [shape: f32[16,32], index: 0, kind: input, shape index: {}]
  %s1 = inlined_call_operand.vmem [shape: f32[32,128], index: 1, kind: input, shape index: {}]
  %s2 = inlined_call_operand.vmem [shape: f32[1,128], index: 2, kind: input, shape index: {}]
  %s3 = inlined_call_operand.vmem [shape: f32[1,128], index: 3, kind: input, shape index: {}]
  %s4 = inlined_call_operand.vmem [shape: f32[1,128], index: 4, kind: input, shape index: {}]
  %s5 = inlined_call_operand.vmem [shape: f32[128,32], index: 5, kind: input, shape index: {}]
  %s6 = inlined_call_operand.vmem [shape: f32[1,32], index: 6, kind: input, shape index: {}]
  %s7 = inlined_call_operand.hbm [shape: f32[16,32], index: 7, kind: output, shape index: {}]
  %s8 = sld [smem:[#allocation0]]
  $region61: #{tpu_custom_call.1} parent=0
    _
  %s10 = ssub.s32 1, %s8
  %s11 = scalar_select 0, %s10, %s8
  $region1: #{tpu_custom_call.1} parent=0
    #allocation2 [shape = 'u8[8192]{0}', space=vmem, size = 0x2000, scoped, tag = 'output window, operand 0']
    #allocation3 [shape = 's32[2]{0}', space=sflag, size = 0x8, scoped, tag = 'scoped memory for tpu_custom_call.1']
    %12 = vsyncpa [#allocation3], 0
    %s13 = scalar_lea.sflag [#allocation3], 1
    %14 = vsyncpa %s13, 0
    loop: start=0, step=1, limit=4
    $region2: #{tpu_custom_call.1} parent=1 // loop_pre_header
      _
    $region3: #{tpu_custom_call.1} parent=1 // loop_header
      %s16 = sphi 0, %s20
      %p17 = scmp.ge.s32.totalorder %s16, 4
      %s26 = sphi 0, %s28
      %s29 = sphi 0, %s26
      %s30 = sphi 0, %s29
      %s46 = sphi 0, %s30
      %s50 = sphi 0, %s50
      %s52 = sphi 0, %s50
      %s53 = sphi 0, %s52
      %s67 = sphi 0, %s53
      %s71 = sphi 0, %s71
      %s73 = sphi 0, %s71
      %s74 = sphi 0, %s73
      %s88 = sphi 0, %s74
      %s92 = sphi 0, %s92
      %s94 = sphi 0, %s92
      %s95 = sphi 0, %s94
      %s109 = sphi 0, %s95
      %s113 = sphi 0, %s113
      %s115 = sphi 0, %s113
      %s116 = sphi 0, %s115
      %s130 = sphi 0, %s116
      %s134 = sphi 0, %s134
      %s136 = sphi 0, %s134
      %s137 = sphi 0, %s136
      %s151 = sphi 0, %s137
      %s155 = sphi 0, %s155
      %s157 = sphi 0, %s155
      %s158 = sphi 0, %s157
      %s172 = sphi 0, %s158
      %s178 = sphi 0, %s180
      %s181 = sphi 0, %s178
      %s182 = sphi 0, %s181
      %s198 = sphi 0, %s182
    $region4: #{tpu_custom_call.1} parent=1 // loop_header_branch
      %19 = sbr.rel (%p17) target = $region8
    $region5: #{tpu_custom_call.1} parent=1 // loop_body
      %s21 = ssub.s32 %s16, 1
      %s22 = ssub.s32 %s16, 2
      %s23 = sadd.s32 %s16, 1
      %s24 = ssub.s32 %s16, %s23
      %p25 = scmp.eq.s32.totalorder %s24, 0
      %s27 = sadd.s32 %s26, 1
      %s28 = scalar_select %p25, %s26, %s27
      %p31 = pneg %p25
      %p32 = scmp.eq.s32.totalorder %s16, 1
      %p33 = por %p31, %p32
      %p34 = scmp.ne.s32.totalorder %s26, %s29
      %p35 = scmp.eq.s32.totalorder %s16, 0
      %p36 = por %p34, %p35
      %p37 = scmp.ne.s32.totalorder %s26, %s29
      %p38 = scmp.eq.s32.totalorder %s21, 1
      %p39 = por %p37, %p38
      %p40 = scmp.ne.s32.totalorder %s29, %s30
      %p41 = scmp.eq.s32.totalorder %s21, 0
      %p42 = por %p40, %p41
      %p43 = scmp.ne.s32.totalorder %s29, %s30
      %p44 = scmp.eq.s32.totalorder %s22, 1
      %p45 = por %p43, %p44
      %p47 = scmp.ne.s32.totalorder %s30, %s46
      %p48 = scmp.eq.s32.totalorder %s22, 0
      %p49 = por %p47, %p48
      %s51 = sadd.s32 %s50, 1
      %p54 = scmp.eq.s32.totalorder %s16, 1
      %p55 = scmp.ne.s32.totalorder %s50, %s52
      %p56 = scmp.eq.s32.totalorder %s16, 0
      %p57 = por %p55, %p56
      %p58 = scmp.ne.s32.totalorder %s50, %s52
      %p59 = scmp.eq.s32.totalorder %s21, 1
      %p60 = por %p58, %p59
      %p61 = scmp.ne.s32.totalorder %s52, %s53
      %p62 = scmp.eq.s32.totalorder %s21, 0
      %p63 = por %p61, %p62
      %p64 = scmp.ne.s32.totalorder %s52, %s53
      %p65 = scmp.eq.s32.totalorder %s22, 1
      %p66 = por %p64, %p65
      %p68 = scmp.ne.s32.totalorder %s53, %s67
      %p69 = scmp.eq.s32.totalorder %s22, 0
      %p70 = por %p68, %p69
      %s72 = sadd.s32 %s71, 1
      %p75 = scmp.eq.s32.totalorder %s16, 1
      %p76 = scmp.ne.s32.totalorder %s71, %s73
      %p77 = scmp.eq.s32.totalorder %s16, 0
      %p78 = por %p76, %p77
      %p79 = scmp.ne.s32.totalorder %s71, %s73
      %p80 = scmp.eq.s32.totalorder %s21, 1
      %p81 = por %p79, %p80
      %p82 = scmp.ne.s32.totalorder %s73, %s74
      %p83 = scmp.eq.s32.totalorder %s21, 0
      %p84 = por %p82, %p83
      %p85 = scmp.ne.s32.totalorder %s73, %s74
      %p86 = scmp.eq.s32.totalorder %s22, 1
      %p87 = por %p85, %p86
      %p89 = scmp.ne.s32.totalorder %s74, %s88
      %p90 = scmp.eq.s32.totalorder %s22, 0
      %p91 = por %p89, %p90
      %s93 = sadd.s32 %s92, 1
      %p96 = scmp.eq.s32.totalorder %s16, 1
      %p97 = scmp.ne.s32.totalorder %s92, %s94
      %p98 = scmp.eq.s32.totalorder %s16, 0
      %p99 = por %p97, %p98
      %p100 = scmp.ne.s32.totalorder %s92, %s94
      %p101 = scmp.eq.s32.totalorder %s21, 1
      %p102 = por %p100, %p101
      %p103 = scmp.ne.s32.totalorder %s94, %s95
      %p104 = scmp.eq.s32.totalorder %s21, 0
      %p105 = por %p103, %p104
      %p106 = scmp.ne.s32.totalorder %s94, %s95
      %p107 = scmp.eq.s32.totalorder %s22, 1
      %p108 = por %p106, %p107
      %p110 = scmp.ne.s32.totalorder %s95, %s109
      %p111 = scmp.eq.s32.totalorder %s22, 0
      %p112 = por %p110, %p111
      %s114 = sadd.s32 %s113, 1
      %p117 = scmp.eq.s32.totalorder %s16, 1
      %p118 = scmp.ne.s32.totalorder %s113, %s115
      %p119 = scmp.eq.s32.totalorder %s16, 0
      %p120 = por %p118, %p119
      %p121 = scmp.ne.s32.totalorder %s113, %s115
      %p122 = scmp.eq.s32.totalorder %s21, 1
      %p123 = por %p121, %p122
      %p124 = scmp.ne.s32.totalorder %s115, %s116
      %p125 = scmp.eq.s32.totalorder %s21, 0
      %p126 = por %p124, %p125
      %p127 = scmp.ne.s32.totalorder %s115, %s116
      %p128 = scmp.eq.s32.totalorder %s22, 1
      %p129 = por %p127, %p128
      %p131 = scmp.ne.s32.totalorder %s116, %s130
      %p132 = scmp.eq.s32.totalorder %s22, 0
      %p133 = por %p131, %p132
      %s135 = sadd.s32 %s134, 1
      %p138 = scmp.eq.s32.totalorder %s16, 1
      %p139 = scmp.ne.s32.totalorder %s134, %s136
      %p140 = scmp.eq.s32.totalorder %s16, 0
      %p141 = por %p139, %p140
      %p142 = scmp.ne.s32.totalorder %s134, %s136
      %p143 = scmp.eq.s32.totalorder %s21, 1
      %p144 = por %p142, %p143
      %p145 = scmp.ne.s32.totalorder %s136, %s137
      %p146 = scmp.eq.s32.totalorder %s21, 0
      %p147 = por %p145, %p146
      %p148 = scmp.ne.s32.totalorder %s136, %s137
      %p149 = scmp.eq.s32.totalorder %s22, 1
      %p150 = por %p148, %p149
      %p152 = scmp.ne.s32.totalorder %s137, %s151
      %p153 = scmp.eq.s32.totalorder %s22, 0
      %p154 = por %p152, %p153
      %s156 = sadd.s32 %s155, 1
      %p159 = scmp.eq.s32.totalorder %s16, 1
      %p160 = scmp.ne.s32.totalorder %s155, %s157
      %p161 = scmp.eq.s32.totalorder %s16, 0
      %p162 = por %p160, %p161
      %p163 = scmp.ne.s32.totalorder %s155, %s157
      %p164 = scmp.eq.s32.totalorder %s21, 1
      %p165 = por %p163, %p164
      %p166 = scmp.ne.s32.totalorder %s157, %s158
      %p167 = scmp.eq.s32.totalorder %s21, 0
      %p168 = por %p166, %p167
      %p169 = scmp.ne.s32.totalorder %s157, %s158
      %p170 = scmp.eq.s32.totalorder %s22, 1
      %p171 = por %p169, %p170
      %p173 = scmp.ne.s32.totalorder %s158, %s172
      %p174 = scmp.eq.s32.totalorder %s22, 0
      %p175 = por %p173, %p174
      %s176 = ssub.s32 %s16, %s23
      %p177 = scmp.eq.s32.totalorder %s176, 0
      %s179 = sadd.s32 %s178, 1
      %s180 = scalar_select %p177, %s178, %s179
      %p183 = pneg %p177
      %p184 = scmp.eq.s32.totalorder %s16, 1
      %p185 = por %p183, %p184
      %p186 = scmp.ne.s32.totalorder %s178, %s181
      %p187 = scmp.eq.s32.totalorder %s16, 0
      %p188 = por %p186, %p187
      %p189 = scmp.ne.s32.totalorder %s178, %s181
      %p190 = scmp.eq.s32.totalorder %s21, 1
      %p191 = por %p189, %p190
      %p192 = scmp.ne.s32.totalorder %s181, %s182
      %p193 = scmp.eq.s32.totalorder %s21, 0
      %p194 = por %p192, %p193
      %p195 = scmp.ne.s32.totalorder %s181, %s182
      %p196 = scmp.eq.s32.totalorder %s22, 1
      %p197 = por %p195, %p196
      %p199 = scmp.ne.s32.totalorder %s182, %s198
      %p200 = scmp.eq.s32.totalorder %s22, 0
      %p201 = por %p199, %p200
      %p202 = scmp.le.s32.totalorder 1, %s16
      %p203 = scmp.lt.s32.totalorder %s16, 3
      %p204 = pnand %p202, %p203
      %p205 = pneg %p204
      // Predicated region
      $region9: #{tpu_custom_call.1} parent=5 // pred_check
        _
      $region10: #{tpu_custom_call.1} parent=5 // pred_check_branch
        %207 = sbr.rel (%p204) target = $region12
      $region11: #{tpu_custom_call.1} parent=5 // pred_region
        %s208 = ssub.s32 %s16, 1
        // Predicated region
        $region13: #{tpu_custom_call.1} parent=11 // pred_check
          %p209 = pneg %p63
        $region14: #{tpu_custom_call.1} parent=11 // pred_check_branch
          %211 = sbr.rel (%p209) target = $region16
        $region15: #{tpu_custom_call.1} parent=11 // pred_region
          _
        $region16: #{tpu_custom_call.1} parent=11 // pred_fallthru
          _
        // Predicated region
        $region17: #{tpu_custom_call.1} parent=11 // pred_check
          %p212 = pneg %p84
        $region18: #{tpu_custom_call.1} parent=11 // pred_check_branch
          %214 = sbr.rel (%p212) target = $region20
        $region19: #{tpu_custom_call.1} parent=11 // pred_region
          _
        $region20: #{tpu_custom_call.1} parent=11 // pred_fallthru
          _
        // Predicated region
        $region21: #{tpu_custom_call.1} parent=11 // pred_check
          %p215 = pneg %p105
        $region22: #{tpu_custom_call.1} parent=11 // pred_check_branch
          %217 = sbr.rel (%p215) target = $region24
        $region23: #{tpu_custom_call.1} parent=11 // pred_region
          _
        $region24: #{tpu_custom_call.1} parent=11 // pred_fallthru
          _
        // Predicated region
        $region25: #{tpu_custom_call.1} parent=11 // pred_check
          %p218 = pneg %p126
        $region26: #{tpu_custom_call.1} parent=11 // pred_check_branch
          %220 = sbr.rel (%p218) target = $region28
        $region27: #{tpu_custom_call.1} parent=11 // pred_region
          _
        $region28: #{tpu_custom_call.1} parent=11 // pred_fallthru
          _
        // Predicated region
        $region29: #{tpu_custom_call.1} parent=11 // pred_check
          %p221 = pneg %p147
        $region30: #{tpu_custom_call.1} parent=11 // pred_check_branch
          %223 = sbr.rel (%p221) target = $region32
        $region31: #{tpu_custom_call.1} parent=11 // pred_region
          _
        $region32: #{tpu_custom_call.1} parent=11 // pred_fallthru
          _
        // Predicated region
        $region33: #{tpu_custom_call.1} parent=11 // pred_check
          %p224 = pneg %p168
        $region34: #{tpu_custom_call.1} parent=11 // pred_check_branch
          %226 = sbr.rel (%p224) target = $region36
        $region35: #{tpu_custom_call.1} parent=11 // pred_region
          _
        $region36: #{tpu_custom_call.1} parent=11 // pred_fallthru
          _
      $region12: #{tpu_custom_call.1} parent=5 // pred_fallthru
        _
      %p227 = scmp.lt.s32.totalorder %s16, 2
      // Predicated region
      $region37: #{tpu_custom_call.1} parent=5 // pred_check
        %p228 = pneg %p227
      $region38: #{tpu_custom_call.1} parent=5 // pred_check_branch
        %230 = sbr.rel (%p228) target = $region40
      $region39: #{tpu_custom_call.1} parent=5 // pred_region
        // Predicated region
        $region41: #{tpu_custom_call.1} parent=39 // pred_check
          %p231 = pneg %p36
        $region42: #{tpu_custom_call.1} parent=39 // pred_check_branch
          %233 = sbr.rel (%p231) target = $region44
        $region43: #{tpu_custom_call.1} parent=39 // pred_region
          %p234 = scmp.lt.s32.totalorder %s16, 1
          %s235 = scalar_select %p234, %s16, 1
          %s236 = smul.addr %s235, 8
          %s237 = scalar_lea.vmem %s0, %s236
        $region44: #{tpu_custom_call.1} parent=39 // pred_fallthru
          _
      $region40: #{tpu_custom_call.1} parent=5 // pred_fallthru
        _
      %p238 = scmp.le.s32.totalorder 1, %s16
      %p239 = scmp.lt.s32.totalorder %s16, 3
      %p240 = pnand %p238, %p239
      %p241 = pneg %p240
      // Predicated region
      $region45: #{tpu_custom_call.1} parent=5 // pred_check
        _
      $region46: #{tpu_custom_call.1} parent=5 // pred_check_branch
        %243 = sbr.rel (%p240) target = $region48
      $region47: #{tpu_custom_call.1} parent=5 // pred_region
        %s244 = ssub.s32 %s16, 1
        %p245 = scmp.lt.s32.totalorder %s21, 1
        %s246 = scalar_select %p245, %s21, 1
        %s247 = smul.addr %s246, 8
        %s248 = scalar_lea.vmem %s0, %s247
        %p249 = pneg %p42
        %p250 = pneg %p39
        %p251 = pneg %p63
        %p252 = pneg %p60
        %p253 = pneg %p84
        %p254 = pneg %p81
        %p255 = pneg %p105
        %p256 = pneg %p102
        %p257 = pneg %p126
        %p258 = pneg %p123
        %p259 = pneg %p147
        %p260 = pneg %p144
        %p261 = pneg %p168
        %p262 = pneg %p165
        %p263 = pneg %p194
        %p264 = pneg %p191
        %s265 = sand.u32 %s181, 1
        %s266 = scalar_lea.sflag [#allocation3], %s265
        %s267 = sand.u32 %s181, 1
        %s268 = smul.addr %s267, 8
        %s269 = scalar_lea.vmem [#allocation2], %s268
        %p270 = scmp.lt.s32.totalorder %s21, 1
        %s271 = scalar_select %p270, %s21, 1
        %s272 = smul.addr %s271, 8
        %s273 = scalar_lea.vmem %s0, %s272
        %v274 = vld [vmem:[%s273] sm:$0xff]
        %v275 = vld [vmem:[%s1] sm:$0xff]
        %v276 = vld [vmem:[%s1 + $0x8] sm:$0xff]
        %v277 = vld [vmem:[%s1 + $0x10] sm:$0xff]
        %v278 = vld [vmem:[%s1 + $0x18] sm:$0xff]
        %v279 = vld [vmem:[%s2] sm:$0x1]
        %v281 = vlaneseq
        %v282 = vshrl.u32 %v281, 7
        %v283 = vsub.s32 0, %v282
        %v284 = vrot.slane %v279, %v283
        %vm286 = vcmask 261120
        %v288 = vsel %vm286, %v274, 0
        %290 = vmatprep.subr.mxu0 0.0
        %291 = vmatpush1.msra.mxu0 %v275
        %292 = vmatprep.subr.mxu0 0.0
        %293 = vmatpush1.msra.mxu0 %v276
        %294 = vmatprep.subr.mxu0 0.0
        %295 = vmatpush1.msra.mxu0 %v277
        %296 = vmatprep.subr.mxu0 0.0
        %297 = vmatpush1.msra.mxu0 %v278
        %298 = vmatprep.subr.mxu0 0.0
        %299 = vmatpush1.msra.mxu0 0.0
        %300 = vmatprep.subr.mxu0 0.0
        %301 = vmatpush1.msra.mxu0 0.0
        %302 = vmatprep.subr.mxu0 0.0
        %303 = vmatpush1.msra.mxu0 0.0
        %304 = vmatprep.subr.mxu0 0.0
        %305 = vmatpush1.msra.mxu0 0.0
        %306 = vmatprep.subr.mxu0 0.0
        %307 = vmatpush1.msra.mxu0 0.0
        %308 = vmatprep.subr.mxu0 0.0
        %309 = vmatpush1.msra.mxu0 0.0
        %310 = vmatprep.subr.mxu0 0.0
        %311 = vmatpush1.msra.mxu0 0.0
        %312 = vmatprep.subr.mxu0 0.0
        %313 = vmatpush1.msra.mxu0 0.0
        %314 = vmatprep.subr.mxu0 0.0
        %315 = vmatpush1.msra.mxu0 0.0
        %316 = vmatprep.subr.mxu0 0.0
        %317 = vmatpush1.msra.mxu0 0.0
        %318 = vmatprep.subr.mxu0 0.0
        %319 = vmatpush1.msra.mxu0 0.0
        %320 = vmatprep.subr.mxu0 0.0
        %321 = vmatpush1.msra.mxu0 0.0
        %322 = vmatprep.subr.mxu0 0.0
        %323 = vmatpush1.msra.mxu0 0.0
        %324 = vmatprep.subr.mxu0 0.0
        %325 = vmatpush1.msra.mxu0 0.0
        %326 = vmatprep.subr.mxu0 0.0
        %327 = vmatpush1.msra.mxu0 0.0
        %328 = vmatprep.subr.mxu0 0.0
        %329 = vmatpush1.msra.mxu0 0.0
        %330 = vmatprep.subr.mxu0 0.0
        %331 = vmatpush1.msra.mxu0 0.0
        %332 = vmatprep.subr.mxu0 0.0
        %333 = vmatpush1.msra.mxu0 0.0
        %334 = vmatprep.subr.mxu0 0.0
        %335 = vmatpush1.msra.mxu0 0.0
        %336 = vmatprep.subr.mxu0 0.0
        %337 = vmatpush1.msra.mxu0 0.0
        %338 = vmatprep.subr.mxu0 0.0
        %339 = vmatpush1.msra.mxu0 0.0
        %340 = vmatprep.subr.mxu0 0.0
        %341 = vmatpush1.msra.mxu0 0.0
        %342 = vmatprep.subr.mxu0 0.0
        %343 = vmatpush1.msra.mxu0 0.0
        %344 = vmatprep.subr.mxu0 0.0
        %345 = vmatpush1.msra.mxu0 0.0
        %346 = vmatprep.subr.mxu0 0.0
        %347 = vmatpush1.msra.mxu0 0.0
        %348 = vmatprep.subr.mxu0 0.0
        %349 = vmatpush1.msra.mxu0 0.0
        %350 = vmatprep.subr.mxu0 0.0
        %351 = vmatpush1.msra.mxu0 0.0
        %352 = vmatprep.subr.mxu0 0.0
        %353 = vmatpush1.msra.mxu0 0.0
        %354 = vmatprep.mubr.f32.mxu0 0.0
        %355 = vmatmul.mubr.f32.gmra.mrb[0].mxu0 %v288
        %v356 = vpop.f32.mrb[0].mxu0
        %v357 = vadd.f32 %v284, %v356
        %v358 = vpop.f32.mrb[0].mxu0
        %359 = vdwg.mxu0
        %360 = vadd.xlane.f32.xlu0 %v357
        %v361 = vpop.xlane.xlu0 %360
        %v362 = vrcp.pop 128.0
        %v363 = vmul.f32 %v361, %v362
        %v364 = vsub.f32 %v357, %v363
        %v365 = vmul.f32 %v364, %v364
        %366 = vadd.xlane.f32.xlu0 %v365
        %v367 = vpop.xlane.xlu0 %366
        %v368 = vmul.f32 %v367, %v362
        %v369 = vadd.f32 %v368, 1e-05
        %v370 = vrsqrt.pop %v369
        %v371 = vmul.f32 %v364, %v370
        %v372 = vld [vmem:[%s3] sm:$0x1]
        %v374 = vlaneseq
        %v375 = vshrl.u32 %v374, 7
        %v376 = vsub.s32 0, %v375
        %v377 = vrot.slane %v372, %v376
        %v379 = vmul.f32 %v371, %v377
        %v380 = vld [vmem:[%s4] sm:$0x1]
        %v382 = vlaneseq
        %v383 = vshrl.u32 %v382, 7
        %v384 = vsub.s32 0, %v383
        %v385 = vrot.slane %v380, %v384
        %v387 = vadd.f32 %v379, %v385
        %v388 = vmul.f32 %v387, 0.70710677
        %v389 = vand.u32 2147483647, %v388
        %v390 = vmul.f32 %v389, 0.3275911
        %v391 = vadd.f32 %v390, 1.0
        %v392 = vrcp.pop %v391
        %v393 = vmul.f32 1.0, %v392
        %v394 = vmul.f32 %v393, 0.5307027
        %v395 = vadd.f32 %v394, -0.72657603
        %v396 = vmul.f32 %v393, %v395
        %v397 = vadd.f32 %v396, 0.7107069
        %v398 = vmul.f32 %v393, %v397
        %v399 = vadd.f32 %v398, -0.14224836
        %v400 = vmul.f32 %v393, %v399
        %v401 = vadd.f32 %v400, 0.1274148
        %v402 = vmul.f32 %v393, %v401
        %v403 = vsub.f32 0.0, %v388
        %v404 = vmul.f32 %v403, %v388
        %v405 = vmul.f32 %v404, 1.442695
        %v406 = vpow.pop %v405
        %v407 = vmul.f32 %v402, %v406
        %vm408 = vcmp.ge.f32.partialorder %v387, 0.0
        %v409 = vsub.f32 1.0, %v407
        %v410 = vsel %vm408, %v409, %v407
        %v411 = vmul.f32 %v387, %v410
        %v412 = vld [vmem:[%s5] sm:$0xff]
        %v413 = vld [vmem:[%s5 + $0x8] sm:$0xff]
        %v414 = vld [vmem:[%s5 + $0x10] sm:$0xff]
        %v415 = vld [vmem:[%s5 + $0x18] sm:$0xff]
        %v416 = vld [vmem:[%s5 + $0x20] sm:$0xff]
        %v417 = vld [vmem:[%s5 + $0x28] sm:$0xff]
        %v418 = vld [vmem:[%s5 + $0x30] sm:$0xff]
        %v419 = vld [vmem:[%s5 + $0x38] sm:$0xff]
        %v420 = vld [vmem:[%s5 + $0x40] sm:$0xff]
        %v421 = vld [vmem:[%s5 + $0x48] sm:$0xff]
        %v422 = vld [vmem:[%s5 + $0x50] sm:$0xff]
        %v423 = vld [vmem:[%s5 + $0x58] sm:$0xff]
        %v424 = vld [vmem:[%s5 + $0x60] sm:$0xff]
        %v425 = vld [vmem:[%s5 + $0x68] sm:$0xff]
        %v426 = vld [vmem:[%s5 + $0x70] sm:$0xff]
        %v427 = vld [vmem:[%s5 + $0x78] sm:$0xff]
        %v428 = vld [vmem:[%s6] sm:$0x1]
        %v430 = vlaneseq
        %v431 = vshrl.u32 %v430, 7
        %v432 = vsub.s32 0, %v431
        %v433 = vrot.slane %v428, %v432
        %435 = vmatprep.subr.mxu0 0.0
        %436 = vmatpush1.msra.mxu0 %v412
        %437 = vmatprep.subr.mxu0 0.0
        %438 = vmatpush1.msra.mxu0 %v413
        %439 = vmatprep.subr.mxu0 0.0
        %440 = vmatpush1.msra.mxu0 %v414
        %441 = vmatprep.subr.mxu0 0.0
        %442 = vmatpush1.msra.mxu0 %v415
        %443 = vmatprep.subr.mxu0 0.0
        %444 = vmatpush1.msra.mxu0 %v416
        %445 = vmatprep.subr.mxu0 0.0
        %446 = vmatpush1.msra.mxu0 %v417
        %447 = vmatprep.subr.mxu0 0.0
        %448 = vmatpush1.msra.mxu0 %v418
        %449 = vmatprep.subr.mxu0 0.0
        %450 = vmatpush1.msra.mxu0 %v419
        %451 = vmatprep.subr.mxu0 0.0
        %452 = vmatpush1.msra.mxu0 %v420
        %453 = vmatprep.subr.mxu0 0.0
        %454 = vmatpush1.msra.mxu0 %v421
        %455 = vmatprep.subr.mxu0 0.0
        %456 = vmatpush1.msra.mxu0 %v422
        %457 = vmatprep.subr.mxu0 0.0
        %458 = vmatpush1.msra.mxu0 %v423
        %459 = vmatprep.subr.mxu0 0.0
        %460 = vmatpush1.msra.mxu0 %v424
        %461 = vmatprep.subr.mxu0 0.0
        %462 = vmatpush1.msra.mxu0 %v425
        %463 = vmatprep.subr.mxu0 0.0
        %464 = vmatpush1.msra.mxu0 %v426
        %465 = vmatprep.subr.mxu0 0.0
        %466 = vmatpush1.msra.mxu0 %v427
        %467 = vmatprep.subr.mxu0 0.0
        %468 = vmatpush1.msra.mxu0 0.0
        %469 = vmatprep.subr.mxu0 0.0
        %470 = vmatpush1.msra.mxu0 0.0
        %471 = vmatprep.subr.mxu0 0.0
        %472 = vmatpush1.msra.mxu0 0.0
        %473 = vmatprep.subr.mxu0 0.0
        %474 = vmatpush1.msra.mxu0 0.0
        %475 = vmatprep.subr.mxu0 0.0
        %476 = vmatpush1.msra.mxu0 0.0
        %477 = vmatprep.subr.mxu0 0.0
        %478 = vmatpush1.msra.mxu0 0.0
        %479 = vmatprep.subr.mxu0 0.0
        %480 = vmatpush1.msra.mxu0 0.0
        %481 = vmatprep.subr.mxu0 0.0
        %482 = vmatpush1.msra.mxu0 0.0
        %483 = vmatprep.subr.mxu0 0.0
        %484 = vmatpush1.msra.mxu0 0.0
        %485 = vmatprep.subr.mxu0 0.0
        %486 = vmatpush1.msra.mxu0 0.0
        %487 = vmatprep.subr.mxu0 0.0
        %488 = vmatpush1.msra.mxu0 0.0
        %489 = vmatprep.subr.mxu0 0.0
        %490 = vmatpush1.msra.mxu0 0.0
        %491 = vmatprep.subr.mxu0 0.0
        %492 = vmatpush1.msra.mxu0 0.0
        %493 = vmatprep.subr.mxu0 0.0
        %494 = vmatpush1.msra.mxu0 0.0
        %495 = vmatprep.subr.mxu0 0.0
        %496 = vmatpush1.msra.mxu0 0.0
        %497 = vmatprep.subr.mxu0 0.0
        %498 = vmatpush1.msra.mxu0 0.0
        %499 = vmatprep.mubr.f32.mxu0 0.0
        %500 = vmatmul.mubr.f32.gmra.mrb[0].mxu0 %v411
        %v501 = vpop.f32.mrb[0].mxu0
        %v502 = vadd.f32 %v433, %v501
        %v503 = vpop.f32.mrb[0].mxu0
        %504 = vdwg.mxu0
        %v505 = vxor.u32 %v502, 2147483648
        %v506 = vmul.f32 %v505, 1.442695
        %v507 = vpow.pop %v506
        %v508 = vadd.f32 %v507, 1.0
        %v509 = vrcp.pop %v508
        %v510 = vmul.f32 1.0, %v509
        %511 = vst.msk [vmem:[%s269] sm:$0xff] %vm286, %v510
        %s512 = sand.u32 %s181, 1
        %s513 = scalar_lea.sflag [#allocation3], %s512
        %s514 = sand.u32 %s181, 1
        %s515 = smul.addr %s514, 8
        %s516 = scalar_lea.vmem [#allocation2], %s515
        // Predicated region
        $region49: #{tpu_custom_call.1} parent=47 // pred_check
          %p517 = pneg %p191
        $region50: #{tpu_custom_call.1} parent=47 // pred_check_branch
          %519 = sbr.rel (%p517) target = $region52
        $region51: #{tpu_custom_call.1} parent=47 // pred_region
          %s521 = ssub.s32 128, 128
          %522 = vsyncadd %s513, %s521
          %s523 = smul.addr %s21, 128
          %s524 = scalar_lea.hbm %s7, %s523
          %s526 = sshll.u32 %s516, 4
          %s527 = int_to_ptr.vmem [resolvable:$true] %s526
          %529 = dma.vmem_to_hbm [thread:$0]  %s527, 128, %s524, %s513
        $region52: #{tpu_custom_call.1} parent=47 // pred_fallthru
          _
      $region48: #{tpu_custom_call.1} parent=5 // pred_fallthru
        _
      %p530 = scmp.le.s32.totalorder 2, %s16
      // Predicated region
      $region53: #{tpu_custom_call.1} parent=5 // pred_check
        %p531 = pneg %p530
      $region54: #{tpu_custom_call.1} parent=5 // pred_check_branch
        %533 = sbr.rel (%p531) target = $region56
      $region55: #{tpu_custom_call.1} parent=5 // pred_region
        %s534 = ssub.s32 %s16, 2
        // Predicated region
        $region57: #{tpu_custom_call.1} parent=55 // pred_check
          %p535 = pneg %p197
        $region58: #{tpu_custom_call.1} parent=55 // pred_check_branch
          %537 = sbr.rel (%p535) target = $region60
        $region59: #{tpu_custom_call.1} parent=55 // pred_region
          %s538 = sand.u32 %s182, 1
          %s539 = scalar_lea.sflag [#allocation3], %s538
          %s540 = sand.u32 %s182, 1
          %s541 = smul.addr %s540, 8
          %s542 = scalar_lea.vmem [#allocation2], %s541
          %543 = dma.done %s539, 128
        $region60: #{tpu_custom_call.1} parent=55 // pred_fallthru
          _
      $region56: #{tpu_custom_call.1} parent=5 // pred_fallthru
        _
    $region6: #{tpu_custom_call.1} parent=1 // loop_footer
      %s20 = sadd.s32 1, %s16
    $region7: #{tpu_custom_call.1} parent=1 // loop_footer_branch
      %15 = sbr.rel target = $region3
    $region8: #{tpu_custom_call.1} parent=1 // loop_exit
      _
    %544 = vsyncpa [#allocation3], 1
    %s545 = scalar_lea.sflag [#allocation3], 1
    %546 = vsyncpa %s545, 1

</llo_original>
